<compile_context>
chip_gen: v7x
topology: tpu7x:2x2x1
jax: 0.10.0
libtpu: 0.0.40
codegen_flags: <defaults>
</compile_context>

<pallas_src>
import math
import functools

import jax
import jax.numpy as jnp
from jax.experimental import pallas as pl
from jax.experimental.pallas import tpu as pltpu

SQRT_HALF = math.sqrt(0.5)

# ----- small synthetic config (mirrors the module's __init__ shapes) -----
SRC_VOCAB = 120        # SOURCE_VOCAB_SIZE
TGT_VOCAB = 128        # TARGET_VOCAB_SIZE
PAD_IDX = 1
MAX_POS = 64           # config.max_positions
EMBED = 32             # config.embedding_size
OUT_EMBED = 32         # config.out_embedding_size
CONV_CHANNELS = 64     # convolutions spec out_channels (same every layer -> no projections)
KERNEL = 3
NUM_LAYERS = 2         # convolutions = ((64, 3, 1),) * 2
DROPOUT = 0.0          # dropout is identity in this forward pass

# MXU input precision knob: set to jnp.bfloat16 on v6e/v7x for ~2x MXU throughput (f32
# accumulation kept via preferred_element_type). Default f32 preserves exact reference
# numerics; all VPU/EUP elementwise math (sigmoid/exp/softmax) stays f32 regardless (v5e).
MXU_INPUT_DTYPE = jnp.float32

VMEM_SPEC = pl.BlockSpec(memory_space=pltpu.MemorySpace.VMEM)


# ----------------------------- in-kernel helpers -----------------------------

def _mm(a, b):
    """2-D MXU matmul, f32 accumulation; operands optionally cast at the MXU boundary."""
    return jnp.dot(a.astype(MXU_INPUT_DTYPE), b.astype(MXU_INPUT_DTYPE),
                   preferred_element_type=jnp.float32)


def _im2col(x, k, left_pad, right_pad):
    """(B, T, C) -> (B*T, k*C) sliding-window columns; zero time-padding built in VMEM."""
    b, t, c = x.shape
    pieces = []
    if left_pad:
        pieces.append(jnp.zeros((b, left_pad, c), jnp.float32))
    pieces.append(x)
    if right_pad:
        pieces.append(jnp.zeros((b, right_pad, c), jnp.float32))
    xp = jnp.concatenate(pieces, axis=1) if len(pieces) > 1 else x
    cols = jnp.concatenate([xp[:, j:j + t, :] for j in range(k)], axis=-1)   # (B, T, k*C)
    return cols.reshape(b * t, k * c)


# ----------------------------- fused Pallas kernels -----------------------------

def _encoder_kernel(*refs, num_layers, k):
    # inputs : emb (B,S,E), fc1_w (E,C), fc1_b (1,C),
    #          [conv_w (k*C,2C), conv_b (1,2C)] * num_layers,
    #          fc2_w (C,E), fc2_b (1,E)
    # outputs: enc_x (B,S,E), enc_y (B,S,E)
    emb_ref, fc1w_ref, fc1b_ref = refs[0], refs[1], refs[2]
    idx = 3
    conv_refs = []
    for _ in range(num_layers):
        conv_refs.append((refs[idx], refs[idx + 1]))
        idx += 2
    fc2w_ref, fc2b_ref = refs[idx], refs[idx + 1]
    encx_ref, ency_ref = refs[idx + 2], refs[idx + 3]

    b, s, e = emb_ref.shape
    emb2 = emb_ref[...].reshape(b * s, e)                        # flatten B*S into MXU M dim
    x = _mm(emb2, fc1w_ref[...]) + fc1b_ref[...]                 # (B*S, C)
    c = x.shape[-1]

    lpad = k // 2
    rpad = k - 1 - lpad                                          # odd kernel -> 'same' padding
    residual = x
    for conv_w, conv_b in conv_refs:                             # res_layer = 1, projection None
        cols = _im2col(x.reshape(b, s, c), k, lpad, rpad)
        y = _mm(cols, conv_w[...]) + conv_b[...]                 # one matmul, K = k*C
        glu = y[:, :c] * jax.nn.sigmoid(y[:, c:])                # GLU over channels (f32 VPU/EUP)
        x = (glu + residual) * SQRT_HALF
        residual = x

    xe = _mm(x, fc2w_ref[...]) + fc2b_ref[...]                   # (B*S, E); GradMultiply = id
    encx_ref[...] = xe.reshape(b, s, e)                          # encoder_out[0]
    ency_ref[...] = ((xe + emb2) * SQRT_HALF).reshape(b, s, e)   # encoder_out[1]


def _decoder_kernel(*refs, num_layers, k):
    # inputs : tgt_emb (B,T,E), enc_x (B,S,E), enc_y (B,S,E), fc1_w (E,C), fc1_b (1,C),
    #          [conv_w (k*C,2C), conv_b (1,2C), win (C,E), bin (1,E), wout (E,C), bout (1,C)] * L,
    #          fc2_w (C,OE), fc2_b (1,OE), fc3_w (OE,V), fc3_b (1,V)
    # output : logits (B,T,V)
    tgt_ref, encx_ref, ency_ref, fc1w_ref, fc1b_ref = refs[:5]
    idx = 5
    layer_refs = []
    for _ in range(num_layers):
        layer_refs.append(refs[idx:idx + 6])
        idx += 6
    fc2w_ref, fc2b_ref, fc3w_ref, fc3b_ref = refs[idx:idx + 4]
    out_ref = refs[idx + 4]

    b, t, e = tgt_ref.shape
    s = encx_ref.shape[1]
    tgt2 = tgt_ref[...].reshape(b * t, e)                        # flatten B*T into MXU M dim
    enc_x = encx_ref[...]
    enc_y = ency_ref[...]

    x = _mm(tgt2, fc1w_ref[...]) + fc1b_ref[...]                 # (B*T, C)
    c = x.shape[-1]

    residual = x
    for conv_w, conv_b, win_w, win_b, wout_w, wout_b in layer_refs:
        # LinearizedConv1d(padding=k-1) + trailing trim == causal conv: left-pad k-1, im2col
        cols = _im2col(x.reshape(b, t, c), k, k - 1, 0)
        y = _mm(cols, conv_w[...]) + conv_b[...]                 # (B*T, 2C)
        glu = y[:, :c] * jax.nn.sigmoid(y[:, c:])                # GLU (dim=2 in TBC == channels)

        # --- AttentionLayer (encoder_padding_mask is None path) ---
        attn_residual = glu
        z = ((_mm(glu, win_w[...]) + win_b[...] + tgt2) * SQRT_HALF).reshape(b, t, e)
        scores = jnp.einsum('bte,bse->bts', z, enc_x, preferred_element_type=jnp.float32)
        m = jnp.max(scores, axis=-1, keepdims=True)
        p = jnp.exp(scores - m)
        attn = p / jnp.sum(p, axis=-1, keepdims=True)
        ctx = jnp.einsum('bts,bse->bte', attn, enc_y, preferred_element_type=jnp.float32)
        ctx = (ctx * (s * math.sqrt(1.0 / s))).reshape(b * t, e)
        xa = (_mm(ctx, wout_w[...]) + wout_b[...] + attn_residual) * SQRT_HALF

        x = (xa + residual) * SQRT_HALF                          # res_layer = 1, projection None
        residual = x

    # fused tail: fc2 -> fc3; only the lane-dense (V = 128) logits are stored
    h = _mm(x, fc2w_ref[...]) + fc2b_ref[...]
    logits = _mm(h, fc3w_ref[...]) + fc3b_ref[...]
    out_ref[...] = logits.reshape(b, t, -1)


# ----------------------------- pallas_call wrappers -----------------------------

def encoder_forward(params, input_embedding):
    bsz, s, e = input_embedding.shape
    args = [input_embedding,
            params['enc_fc1_w'], params['enc_fc1_b'].reshape(1, -1)]
    for w, b in params['enc_convs']:
        args += [w.reshape(-1, w.shape[-1]), b.reshape(1, -1)]    # (k,Cin,2C) -> (k*Cin, 2C)
    args += [params['enc_fc2_w'], params['enc_fc2_b'].reshape(1, -1)]
    kern = functools.partial(_encoder_kernel, num_layers=NUM_LAYERS, k=KERNEL)
    return pl.pallas_call(
        kern,
        out_shape=(jax.ShapeDtypeStruct((bsz, s, e), jnp.float32),
                   jax.ShapeDtypeStruct((bsz, s, e), jnp.float32)),
        in_specs=[VMEM_SPEC] * len(args),
        out_specs=(VMEM_SPEC, VMEM_SPEC),
    )(*args)


def decoder_forward(params, target_embedding, enc_x, enc_y):
    bsz, t, _ = target_embedding.shape
    args = [target_embedding, enc_x, enc_y,
            params['dec_fc1_w'], params['dec_fc1_b'].reshape(1, -1)]
    for w, b, win, bin_, wout, bout in params['dec_layers']:
        args += [w.reshape(-1, w.shape[-1]), b.reshape(1, -1),
                 win, bin_.reshape(1, -1), wout, bout.reshape(1, -1)]
    args += [params['dec_fc2_w'], params['dec_fc2_b'].reshape(1, -1),
             params['dec_fc3_w'], params['dec_fc3_b'].reshape(1, -1)]
    kern = functools.partial(_decoder_kernel, num_layers=NUM_LAYERS, k=KERNEL)
    return pl.pallas_call(
        kern,
        out_shape=jax.ShapeDtypeStruct((bsz, t, TGT_VOCAB), jnp.float32),
        in_specs=[VMEM_SPEC] * len(args),
        out_specs=VMEM_SPEC,
    )(*args)


# ----------------------------- parameters -----------------------------

def init_params(key):
    keys = iter(jax.random.split(key, 64))

    def nrm(shape, std):
        return std * jax.random.normal(next(keys), shape, jnp.float32)

    p = {}
    # encoder
    p['enc_embed'] = nrm((SRC_VOCAB, EMBED), 0.1).at[PAD_IDX].set(0.0)
    p['enc_pos'] = nrm((MAX_POS + PAD_IDX + 1, EMBED), 0.1).at[PAD_IDX].set(0.0)
    p['enc_fc1_w'] = nrm((EMBED, CONV_CHANNELS), math.sqrt(1.0 / EMBED))
    p['enc_fc1_b'] = jnp.zeros((CONV_CHANNELS,), jnp.float32)
    p['enc_convs'] = []
    cin = CONV_CHANNELS
    for _ in range(NUM_LAYERS):
        w = nrm((KERNEL, cin, 2 * CONV_CHANNELS), math.sqrt(4.0 / (KERNEL * cin)))
        b = jnp.zeros((2 * CONV_CHANNELS,), jnp.float32)
        p['enc_convs'].append((w, b))
        cin = CONV_CHANNELS
    p['enc_fc2_w'] = nrm((CONV_CHANNELS, EMBED), math.sqrt(1.0 / CONV_CHANNELS))
    p['enc_fc2_b'] = jnp.zeros((EMBED,), jnp.float32)

    # decoder
    p['dec_embed'] = nrm((TGT_VOCAB, EMBED), 0.1).at[PAD_IDX].set(0.0)
    p['dec_pos'] = nrm((MAX_POS + PAD_IDX + 1, EMBED), 0.1).at[PAD_IDX].set(0.0)
    p['dec_fc1_w'] = nrm((EMBED, CONV_CHANNELS), math.sqrt(1.0 / EMBED))
    p['dec_fc1_b'] = jnp.zeros((CONV_CHANNELS,), jnp.float32)
    p['dec_layers'] = []
    cin = CONV_CHANNELS
    for _ in range(NUM_LAYERS):
        w = nrm((KERNEL, cin, 2 * CONV_CHANNELS), math.sqrt(4.0 / (KERNEL * cin)))
        b = jnp.zeros((2 * CONV_CHANNELS,), jnp.float32)
        win = nrm((CONV_CHANNELS, EMBED), math.sqrt(1.0 / CONV_CHANNELS))   # in_projection^T
        bin_ = jnp.zeros((EMBED,), jnp.float32)
        wout = nrm((EMBED, CONV_CHANNELS), math.sqrt(1.0 / EMBED))          # out_projection^T
        bout = jnp.zeros((CONV_CHANNELS,), jnp.float32)
        p['dec_layers'].append((w, b, win, bin_, wout, bout))
        cin = CONV_CHANNELS
    p['dec_fc2_w'] = nrm((CONV_CHANNELS, OUT_EMBED), math.sqrt(1.0 / CONV_CHANNELS))
    p['dec_fc2_b'] = jnp.zeros((OUT_EMBED,), jnp.float32)
    p['dec_fc3_w'] = nrm((OUT_EMBED, TGT_VOCAB), math.sqrt(1.0 / OUT_EMBED))
    p['dec_fc3_b'] = jnp.zeros((TGT_VOCAB,), jnp.float32)
    return p


# ----------------------------- forward pass -----------------------------

def convs2s_forward(params, src_tokens, prev_output_tokens):
    bsz, src_len = src_tokens.shape
    _, tgt_len = prev_output_tokens.shape

    # positions (no PAD tokens -> fairseq make_positions == padding_idx + 1 + arange)
    src_pos = PAD_IDX + 1 + jnp.arange(src_len)
    tgt_pos = PAD_IDX + 1 + jnp.arange(tgt_len)

    # embedding gathers stay in XLA; everything downstream runs inside two fused Pallas kernels.
    input_embedding = params['enc_embed'][src_tokens] + params['enc_pos'][src_pos][None]   # (B,S,E)
    target_embedding = params['dec_embed'][prev_output_tokens] + params['dec_pos'][tgt_pos][None]

    enc_x, enc_y = encoder_forward(params, input_embedding)            # fused FConvEncoder
    decoder_out = decoder_forward(params, target_embedding, enc_x, enc_y)   # fused FConvDecoder

    lprobs = decoder_out.reshape(-1, decoder_out.shape[-1])            # view(-1, vocab), no softmax
    return decoder_out, lprobs


# ----------------------------- main -----------------------------

if __name__ == "__main__":
    key = jax.random.PRNGKey(0)
    pkey, skey, tkey = jax.random.split(key, 3)
    params = init_params(pkey)

    B, S, T = 2, 16, 8
    # tokens in [2, vocab) so none equal PAD_IDX -> encoder_padding_mask is None
    src_tokens = jax.random.randint(skey, (B, S), 2, SRC_VOCAB, dtype=jnp.int32)
    prev_output_tokens = jax.random.randint(tkey, (B, T), 2, TGT_VOCAB, dtype=jnp.int32)
    src_lengths = jnp.full((B,), S, dtype=jnp.int32)  # API parity; unused (no padding)

    fwd = jax.jit(convs2s_forward)
    decoder_out, lprobs = fwd(params, src_tokens, prev_output_tokens)
    jax.block_until_ready(decoder_out)
    jax.block_until_ready(lprobs)

    assert decoder_out.shape == (B, T, TGT_VOCAB)
    assert lprobs.shape == (B * T, TGT_VOCAB)
    assert bool(jnp.all(jnp.isfinite(decoder_out)))
    print("KERNEL_OK")
</pallas_src>

<mosaic_0001>
module attributes {stable_mosaic.version = 11 : i64} {
  func.func @_encoder_kernel(%arg0: memref<2x16x32xf32, #tpu.memory_space<vmem>>, %arg1: memref<32x64xf32, #tpu.memory_space<vmem>>, %arg2: memref<1x64xf32, #tpu.memory_space<vmem>>, %arg3: memref<192x128xf32, #tpu.memory_space<vmem>>, %arg4: memref<1x128xf32, #tpu.memory_space<vmem>>, %arg5: memref<192x128xf32, #tpu.memory_space<vmem>>, %arg6: memref<1x128xf32, #tpu.memory_space<vmem>>, %arg7: memref<64x32xf32, #tpu.memory_space<vmem>>, %arg8: memref<1x32xf32, #tpu.memory_space<vmem>>, %arg9: memref<2x16x32xf32, #tpu.memory_space<vmem>>, %arg10: memref<2x16x32xf32, #tpu.memory_space<vmem>>) attributes {dimension_semantics = [], scalar_prefetch = 0 : i64, scratch_operands = 0 : i64, tpu.core_type = #tpu.core_type<tc>} {
    %c0 = arith.constant 0 : index
    %c0_0 = arith.constant 0 : index
    %c0_1 = arith.constant 0 : index
    %0 = vector.load %arg0[%c0, %c0_0, %c0_1] : memref<2x16x32xf32, #tpu.memory_space<vmem>>, vector<2x16x32xf32>
    %1 = vector.shape_cast %0 : vector<2x16x32xf32> to vector<32x32xf32>
    %c0_2 = arith.constant 0 : index
    %c0_3 = arith.constant 0 : index
    %2 = vector.load %arg1[%c0_2, %c0_3] : memref<32x64xf32, #tpu.memory_space<vmem>>, vector<32x64xf32>
    %cst = arith.constant dense<0.000000e+00> : vector<32x64xf32>
    %3 = tpu.matmul %1, %2, %cst {dimension_numbers = #tpu.dot_dimension_numbers<[1], [0], [0], [1], [0, 0, 1, 1], [], []>} : vector<32x32xf32>, vector<32x64xf32>, vector<32x64xf32> -> vector<32x64xf32>
    %c0_4 = arith.constant 0 : index
    %c0_5 = arith.constant 0 : index
    %4 = vector.load %arg2[%c0_4, %c0_5] : memref<1x64xf32, #tpu.memory_space<vmem>>, vector<1x64xf32>
    %5 = vector.broadcast %4 : vector<1x64xf32> to vector<32x64xf32>
    %6 = arith.addf %3, %5 : vector<32x64xf32>
    %7 = vector.shape_cast %6 : vector<32x64xf32> to vector<2x16x64xf32>
    %cst_6 = arith.constant 0.000000e+00 : f32
    %8 = vector.broadcast %cst_6 : f32 to vector<2x1x64xf32>
    %cst_7 = arith.constant 0.000000e+00 : f32
    %9 = vector.broadcast %cst_7 : f32 to vector<2x1x64xf32>
    %10 = tpu.concatenate %8, %7, %9 in 1 : vector<2x1x64xf32>, vector<2x16x64xf32>, vector<2x1x64xf32> -> vector<2x18x64xf32>
    %11 = vector.extract_strided_slice %10 {offsets = [0, 0, 0], sizes = [2, 16, 64], strides = [1, 1, 1]} : vector<2x18x64xf32> to vector<2x16x64xf32>
    %12 = vector.extract_strided_slice %10 {offsets = [0, 1, 0], sizes = [2, 16, 64], strides = [1, 1, 1]} : vector<2x18x64xf32> to vector<2x16x64xf32>
    %13 = vector.extract_strided_slice %10 {offsets = [0, 2, 0], sizes = [2, 16, 64], strides = [1, 1, 1]} : vector<2x18x64xf32> to vector<2x16x64xf32>
    %14 = tpu.concatenate %11, %12, %13 in 2 : vector<2x16x64xf32>, vector<2x16x64xf32>, vector<2x16x64xf32> -> vector<2x16x192xf32>
    %15 = vector.shape_cast %14 : vector<2x16x192xf32> to vector<32x192xf32>
    %c0_8 = arith.constant 0 : index
    %c0_9 = arith.constant 0 : index
    %16 = vector.load %arg3[%c0_8, %c0_9] : memref<192x128xf32, #tpu.memory_space<vmem>>, vector<192x128xf32>
    %cst_10 = arith.constant dense<0.000000e+00> : vector<32x128xf32>
    %17 = tpu.matmul %15, %16, %cst_10 {dimension_numbers = #tpu.dot_dimension_numbers<[1], [0], [0], [1], [0, 0, 1, 1], [], []>} : vector<32x192xf32>, vector<192x128xf32>, vector<32x128xf32> -> vector<32x128xf32>
    %c0_11 = arith.constant 0 : index
    %c0_12 = arith.constant 0 : index
    %18 = vector.load %arg4[%c0_11, %c0_12] : memref<1x128xf32, #tpu.memory_space<vmem>>, vector<1x128xf32>
    %19 = vector.broadcast %18 : vector<1x128xf32> to vector<32x128xf32>
    %20 = arith.addf %17, %19 : vector<32x128xf32>
    %21 = vector.extract_strided_slice %20 {offsets = [0, 0], sizes = [32, 64], strides = [1, 1]} : vector<32x128xf32> to vector<32x64xf32>
    %22 = vector.extract_strided_slice %20 {offsets = [0, 64], sizes = [32, 64], strides = [1, 1]} : vector<32x128xf32> to vector<32x64xf32>
    %23 = arith.negf %22 : vector<32x64xf32>
    %24 = math.exp %23 : vector<32x64xf32>
    %cst_13 = arith.constant 1.000000e+00 : f32
    %25 = vector.broadcast %cst_13 : f32 to vector<32x64xf32>
    %26 = arith.addf %25, %24 : vector<32x64xf32>
    %27 = arith.divf %25, %26 : vector<32x64xf32>
    %28 = arith.mulf %21, %27 : vector<32x64xf32>
    %29 = arith.addf %28, %6 : vector<32x64xf32>
    %cst_14 = arith.constant 0.707106769 : f32
    %30 = vector.broadcast %cst_14 : f32 to vector<32x64xf32>
    %31 = arith.mulf %29, %30 : vector<32x64xf32>
    %32 = vector.shape_cast %31 : vector<32x64xf32> to vector<2x16x64xf32>
    %cst_15 = arith.constant 0.000000e+00 : f32
    %33 = vector.broadcast %cst_15 : f32 to vector<2x1x64xf32>
    %cst_16 = arith.constant 0.000000e+00 : f32
    %34 = vector.broadcast %cst_16 : f32 to vector<2x1x64xf32>
    %35 = tpu.concatenate %33, %32, %34 in 1 : vector<2x1x64xf32>, vector<2x16x64xf32>, vector<2x1x64xf32> -> vector<2x18x64xf32>
    %36 = vector.extract_strided_slice %35 {offsets = [0, 0, 0], sizes = [2, 16, 64], strides = [1, 1, 1]} : vector<2x18x64xf32> to vector<2x16x64xf32>
    %37 = vector.extract_strided_slice %35 {offsets = [0, 1, 0], sizes = [2, 16, 64], strides = [1, 1, 1]} : vector<2x18x64xf32> to vector<2x16x64xf32>
    %38 = vector.extract_strided_slice %35 {offsets = [0, 2, 0], sizes = [2, 16, 64], strides = [1, 1, 1]} : vector<2x18x64xf32> to vector<2x16x64xf32>
    %39 = tpu.concatenate %36, %37, %38 in 2 : vector<2x16x64xf32>, vector<2x16x64xf32>, vector<2x16x64xf32> -> vector<2x16x192xf32>
    %40 = vector.shape_cast %39 : vector<2x16x192xf32> to vector<32x192xf32>
    %c0_17 = arith.constant 0 : index
    %c0_18 = arith.constant 0 : index
    %41 = vector.load %arg5[%c0_17, %c0_18] : memref<192x128xf32, #tpu.memory_space<vmem>>, vector<192x128xf32>
    %cst_19 = arith.constant dense<0.000000e+00> : vector<32x128xf32>
    %42 = tpu.matmul %40, %41, %cst_19 {dimension_numbers = #tpu.dot_dimension_numbers<[1], [0], [0], [1], [0, 0, 1, 1], [], []>} : vector<32x192xf32>, vector<192x128xf32>, vector<32x128xf32> -> vector<32x128xf32>
    %c0_20 = arith.constant 0 : index
    %c0_21 = arith.constant 0 : index
    %43 = vector.load %arg6[%c0_20, %c0_21] : memref<1x128xf32, #tpu.memory_space<vmem>>, vector<1x128xf32>
    %44 = vector.broadcast %43 : vector<1x128xf32> to vector<32x128xf32>
    %45 = arith.addf %42, %44 : vector<32x128xf32>
    %46 = vector.extract_strided_slice %45 {offsets = [0, 0], sizes = [32, 64], strides = [1, 1]} : vector<32x128xf32> to vector<32x64xf32>
    %47 = vector.extract_strided_slice %45 {offsets = [0, 64], sizes = [32, 64], strides = [1, 1]} : vector<32x128xf32> to vector<32x64xf32>
    %48 = arith.negf %47 : vector<32x64xf32>
    %49 = math.exp %48 : vector<32x64xf32>
    %cst_22 = arith.constant 1.000000e+00 : f32
    %50 = vector.broadcast %cst_22 : f32 to vector<32x64xf32>
    %51 = arith.addf %50, %49 : vector<32x64xf32>
    %52 = arith.divf %50, %51 : vector<32x64xf32>
    %53 = arith.mulf %46, %52 : vector<32x64xf32>
    %54 = arith.addf %53, %31 : vector<32x64xf32>
    %cst_23 = arith.constant 0.707106769 : f32
    %55 = vector.broadcast %cst_23 : f32 to vector<32x64xf32>
    %56 = arith.mulf %54, %55 : vector<32x64xf32>
    %c0_24 = arith.constant 0 : index
    %c0_25 = arith.constant 0 : index
    %57 = vector.load %arg7[%c0_24, %c0_25] : memref<64x32xf32, #tpu.memory_space<vmem>>, vector<64x32xf32>
    %cst_26 = arith.constant dense<0.000000e+00> : vector<32x32xf32>
    %58 = tpu.matmul %56, %57, %cst_26 {dimension_numbers = #tpu.dot_dimension_numbers<[1], [0], [0], [1], [0, 0, 1, 1], [], []>} : vector<32x64xf32>, vector<64x32xf32>, vector<32x32xf32> -> vector<32x32xf32>
    %c0_27 = arith.constant 0 : index
    %c0_28 = arith.constant 0 : index
    %59 = vector.load %arg8[%c0_27, %c0_28] : memref<1x32xf32, #tpu.memory_space<vmem>>, vector<1x32xf32>
    %60 = vector.broadcast %59 : vector<1x32xf32> to vector<32x32xf32>
    %61 = arith.addf %58, %60 : vector<32x32xf32>
    %62 = vector.shape_cast %61 : vector<32x32xf32> to vector<2x16x32xf32>
    %c0_29 = arith.constant 0 : index
    %c0_30 = arith.constant 0 : index
    %c0_31 = arith.constant 0 : index
    %63 = vector.load %arg9[%c0_29, %c0_30, %c0_31] : memref<2x16x32xf32, #tpu.memory_space<vmem>>, vector<2x16x32xf32>
    tpu.vector_store %arg9[%c0_29, %c0_30, %c0_31], %62 {strides = array<i32>} : memref<2x16x32xf32, #tpu.memory_space<vmem>>, vector<2x16x32xf32>,
    %64 = arith.addf %61, %1 : vector<32x32xf32>
    %cst_32 = arith.constant 0.707106769 : f32
    %65 = vector.broadcast %cst_32 : f32 to vector<32x32xf32>
    %66 = arith.mulf %64, %65 : vector<32x32xf32>
    %67 = vector.shape_cast %66 : vector<32x32xf32> to vector<2x16x32xf32>
    %c0_33 = arith.constant 0 : index
    %c0_34 = arith.constant 0 : index
    %c0_35 = arith.constant 0 : index
    %68 = vector.load %arg10[%c0_33, %c0_34, %c0_35] : memref<2x16x32xf32, #tpu.memory_space<vmem>>, vector<2x16x32xf32>
    tpu.vector_store %arg10[%c0_33, %c0_34, %c0_35], %67 {strides = array<i32>} : memref<2x16x32xf32, #tpu.memory_space<vmem>>, vector<2x16x32xf32>,
    return
  }
}

module attributes {stable_mosaic.version = 11 : i64} {
  func.func @_decoder_kernel(%arg0: memref<2x8x32xf32, #tpu.memory_space<vmem>>, %arg1: memref<2x16x32xf32, #tpu.memory_space<vmem>>, %arg2: memref<2x16x32xf32, #tpu.memory_space<vmem>>, %arg3: memref<32x64xf32, #tpu.memory_space<vmem>>, %arg4: memref<1x64xf32, #tpu.memory_space<vmem>>, %arg5: memref<192x128xf32, #tpu.memory_space<vmem>>, %arg6: memref<1x128xf32, #tpu.memory_space<vmem>>, %arg7: memref<64x32xf32, #tpu.memory_space<vmem>>, %arg8: memref<1x32xf32, #tpu.memory_space<vmem>>, %arg9: memref<32x64xf32, #tpu.memory_space<vmem>>, %arg10: memref<1x64xf32, #tpu.memory_space<vmem>>, %arg11: memref<192x128xf32, #tpu.memory_space<vmem>>, %arg12: memref<1x128xf32, #tpu.memory_space<vmem>>, %arg13: memref<64x32xf32, #tpu.memory_space<vmem>>, %arg14: memref<1x32xf32, #tpu.memory_space<vmem>>, %arg15: memref<32x64xf32, #tpu.memory_space<vmem>>, %arg16: memref<1x64xf32, #tpu.memory_space<vmem>>, %arg17: memref<64x32xf32, #tpu.memory_space<vmem>>, %arg18: memref<1x32xf32, #tpu.memory_space<vmem>>, %arg19: memref<32x128xf32, #tpu.memory_space<vmem>>, %arg20: memref<1x128xf32, #tpu.memory_space<vmem>>, %arg21: memref<2x8x128xf32, #tpu.memory_space<vmem>>) attributes {dimension_semantics = [], scalar_prefetch = 0 : i64, scratch_operands = 0 : i64, tpu.core_type = #tpu.core_type<tc>} {
    %c0 = arith.constant 0 : index
    %c0_0 = arith.constant 0 : index
    %c0_1 = arith.constant 0 : index
    %0 = vector.load %arg0[%c0, %c0_0, %c0_1] : memref<2x8x32xf32, #tpu.memory_space<vmem>>, vector<2x8x32xf32>
    %1 = vector.shape_cast %0 : vector<2x8x32xf32> to vector<16x32xf32>
    %c0_2 = arith.constant 0 : index
    %c0_3 = arith.constant 0 : index
    %c0_4 = arith.constant 0 : index
    %2 = vector.load %arg1[%c0_2, %c0_3, %c0_4] : memref<2x16x32xf32, #tpu.memory_space<vmem>>, vector<2x16x32xf32>
    %c0_5 = arith.constant 0 : index
    %c0_6 = arith.constant 0 : index
    %c0_7 = arith.constant 0 : index
    %3 = vector.load %arg2[%c0_5, %c0_6, %c0_7] : memref<2x16x32xf32, #tpu.memory_space<vmem>>, vector<2x16x32xf32>
    %c0_8 = arith.constant 0 : index
    %c0_9 = arith.constant 0 : index
    %4 = vector.load %arg3[%c0_8, %c0_9] : memref<32x64xf32, #tpu.memory_space<vmem>>, vector<32x64xf32>
    %cst = arith.constant dense<0.000000e+00> : vector<16x64xf32>
    %5 = tpu.matmul %1, %4, %cst {dimension_numbers = #tpu.dot_dimension_numbers<[1], [0], [0], [1], [0, 0, 1, 1], [], []>} : vector<16x32xf32>, vector<32x64xf32>, vector<16x64xf32> -> vector<16x64xf32>
    %c0_10 = arith.constant 0 : index
    %c0_11 = arith.constant 0 : index
    %6 = vector.load %arg4[%c0_10, %c0_11] : memref<1x64xf32, #tpu.memory_space<vmem>>, vector<1x64xf32>
    %7 = vector.broadcast %6 : vector<1x64xf32> to vector<16x64xf32>
    %8 = arith.addf %5, %7 : vector<16x64xf32>
    %9 = vector.shape_cast %8 : vector<16x64xf32> to vector<2x8x64xf32>
    %cst_12 = arith.constant 0.000000e+00 : f32
    %10 = vector.broadcast %cst_12 : f32 to vector<2x2x64xf32>
    %11 = tpu.concatenate %10, %9 in 1 : vector<2x2x64xf32>, vector<2x8x64xf32> -> vector<2x10x64xf32>
    %12 = vector.extract_strided_slice %11 {offsets = [0, 0, 0], sizes = [2, 8, 64], strides = [1, 1, 1]} : vector<2x10x64xf32> to vector<2x8x64xf32>
    %13 = vector.extract_strided_slice %11 {offsets = [0, 1, 0], sizes = [2, 8, 64], strides = [1, 1, 1]} : vector<2x10x64xf32> to vector<2x8x64xf32>
    %14 = vector.extract_strided_slice %11 {offsets = [0, 2, 0], sizes = [2, 8, 64], strides = [1, 1, 1]} : vector<2x10x64xf32> to vector<2x8x64xf32>
    %15 = tpu.concatenate %12, %13, %14 in 2 : vector<2x8x64xf32>, vector<2x8x64xf32>, vector<2x8x64xf32> -> vector<2x8x192xf32>
    %16 = vector.shape_cast %15 : vector<2x8x192xf32> to vector<16x192xf32>
    %c0_13 = arith.constant 0 : index
    %c0_14 = arith.constant 0 : index
    %17 = vector.load %arg5[%c0_13, %c0_14] : memref<192x128xf32, #tpu.memory_space<vmem>>, vector<192x128xf32>
    %cst_15 = arith.constant dense<0.000000e+00> : vector<16x128xf32>
    %18 = tpu.matmul %16, %17, %cst_15 {dimension_numbers = #tpu.dot_dimension_numbers<[1], [0], [0], [1], [0, 0, 1, 1], [], []>} : vector<16x192xf32>, vector<192x128xf32>, vector<16x128xf32> -> vector<16x128xf32>
    %c0_16 = arith.constant 0 : index
    %c0_17 = arith.constant 0 : index
    %19 = vector.load %arg6[%c0_16, %c0_17] : memref<1x128xf32, #tpu.memory_space<vmem>>, vector<1x128xf32>
    %20 = vector.broadcast %19 : vector<1x128xf32> to vector<16x128xf32>
    %21 = arith.addf %18, %20 : vector<16x128xf32>
    %22 = vector.extract_strided_slice %21 {offsets = [0, 0], sizes = [16, 64], strides = [1, 1]} : vector<16x128xf32> to vector<16x64xf32>
    %23 = vector.extract_strided_slice %21 {offsets = [0, 64], sizes = [16, 64], strides = [1, 1]} : vector<16x128xf32> to vector<16x64xf32>
    %24 = arith.negf %23 : vector<16x64xf32>
    %25 = math.exp %24 : vector<16x64xf32>
    %cst_18 = arith.constant 1.000000e+00 : f32
    %26 = vector.broadcast %cst_18 : f32 to vector<16x64xf32>
    %27 = arith.addf %26, %25 : vector<16x64xf32>
    %28 = arith.divf %26, %27 : vector<16x64xf32>
    %29 = arith.mulf %22, %28 : vector<16x64xf32>
    %c0_19 = arith.constant 0 : index
    %c0_20 = arith.constant 0 : index
    %30 = vector.load %arg7[%c0_19, %c0_20] : memref<64x32xf32, #tpu.memory_space<vmem>>, vector<64x32xf32>
    %cst_21 = arith.constant dense<0.000000e+00> : vector<16x32xf32>
    %31 = tpu.matmul %29, %30, %cst_21 {dimension_numbers = #tpu.dot_dimension_numbers<[1], [0], [0], [1], [0, 0, 1, 1], [], []>} : vector<16x64xf32>, vector<64x32xf32>, vector<16x32xf32> -> vector<16x32xf32>
    %c0_22 = arith.constant 0 : index
    %c0_23 = arith.constant 0 : index
    %32 = vector.load %arg8[%c0_22, %c0_23] : memref<1x32xf32, #tpu.memory_space<vmem>>, vector<1x32xf32>
    %33 = vector.broadcast %32 : vector<1x32xf32> to vector<16x32xf32>
    %34 = arith.addf %31, %33 : vector<16x32xf32>
    %35 = arith.addf %34, %1 : vector<16x32xf32>
    %cst_24 = arith.constant 0.707106769 : f32
    %36 = vector.broadcast %cst_24 : f32 to vector<16x32xf32>
    %37 = arith.mulf %35, %36 : vector<16x32xf32>
    %38 = vector.shape_cast %37 : vector<16x32xf32> to vector<2x8x32xf32>
    "tpu.trace_start"() <{level = 10 : i32, message = "bte,bse->bts"}> : () -> ()
    %cst_25 = arith.constant dense<0.000000e+00> : vector<2x8x16xf32>
    %39 = tpu.matmul %38, %2, %cst_25 {dimension_numbers = #tpu.dot_dimension_numbers<[2], [2], [1], [1], [0, 0, 0, 1, 1, 1], [0], [0]>} : vector<2x8x32xf32>, vector<2x16x32xf32>, vector<2x8x16xf32> -> vector<2x8x16xf32>
    "tpu.trace_stop"() : () -> ()
    %cst_26 = arith.constant dense<0xFF800000> : vector<2x8xf32>
    %40 = vector.multi_reduction <maximumf>, %39, %cst_26 [2] : vector<2x8x16xf32> to vector<2x8xf32>
    %41 = vector.shape_cast %40 : vector<2x8xf32> to vector<2x8x1xf32>
    %42 = vector.broadcast %41 : vector<2x8x1xf32> to vector<2x8x16xf32>
    %43 = arith.subf %39, %42 : vector<2x8x16xf32>
    %44 = math.exp %43 : vector<2x8x16xf32>
    %cst_27 = arith.constant dense<0.000000e+00> : vector<2x8xf32>
    %45 = vector.multi_reduction <add>, %44, %cst_27 [2] : vector<2x8x16xf32> to vector<2x8xf32>
    %46 = vector.shape_cast %45 : vector<2x8xf32> to vector<2x8x1xf32>
    %47 = vector.broadcast %46 : vector<2x8x1xf32> to vector<2x8x16xf32>
    %48 = arith.divf %44, %47 : vector<2x8x16xf32>
    "tpu.trace_start"() <{level = 10 : i32, message = "bts,bse->bte"}> : () -> ()
    %cst_28 = arith.constant dense<0.000000e+00> : vector<2x8x32xf32>
    %49 = tpu.matmul %48, %3, %cst_28 {dimension_numbers = #tpu.dot_dimension_numbers<[2], [1], [1], [2], [0, 0, 0, 1, 1, 2], [0], [0]>} : vector<2x8x16xf32>, vector<2x16x32xf32>, vector<2x8x32xf32> -> vector<2x8x32xf32>
    "tpu.trace_stop"() : () -> ()
    %cst_29 = arith.constant 4.000000e+00 : f32
    %50 = vector.broadcast %cst_29 : f32 to vector<2x8x32xf32>
    %51 = arith.mulf %49, %50 : vector<2x8x32xf32>
    %52 = vector.shape_cast %51 : vector<2x8x32xf32> to vector<16x32xf32>
    %c0_30 = arith.constant 0 : index
    %c0_31 = arith.constant 0 : index
    %53 = vector.load %arg9[%c0_30, %c0_31] : memref<32x64xf32, #tpu.memory_space<vmem>>, vector<32x64xf32>
    %cst_32 = arith.constant dense<0.000000e+00> : vector<16x64xf32>
    %54 = tpu.matmul %52, %53, %cst_32 {dimension_numbers = #tpu.dot_dimension_numbers<[1], [0], [0], [1], [0, 0, 1, 1], [], []>} : vector<16x32xf32>, vector<32x64xf32>, vector<16x64xf32> -> vector<16x64xf32>
    %c0_33 = arith.constant 0 : index
    %c0_34 = arith.constant 0 : index
    %55 = vector.load %arg10[%c0_33, %c0_34] : memref<1x64xf32, #tpu.memory_space<vmem>>, vector<1x64xf32>
    %56 = vector.broadcast %55 : vector<1x64xf32> to vector<16x64xf32>
    %57 = arith.addf %54, %56 : vector<16x64xf32>
    %58 = arith.addf %57, %29 : vector<16x64xf32>
    %cst_35 = arith.constant 0.707106769 : f32
    %59 = vector.broadcast %cst_35 : f32 to vector<16x64xf32>
    %60 = arith.mulf %58, %59 : vector<16x64xf32>
    %61 = arith.addf %60, %8 : vector<16x64xf32>
    %cst_36 = arith.constant 0.707106769 : f32
    %62 = vector.broadcast %cst_36 : f32 to vector<16x64xf32>
    %63 = arith.mulf %61, %62 : vector<16x64xf32>
    %64 = vector.shape_cast %63 : vector<16x64xf32> to vector<2x8x64xf32>
    %cst_37 = arith.constant 0.000000e+00 : f32
    %65 = vector.broadcast %cst_37 : f32 to vector<2x2x64xf32>
    %66 = tpu.concatenate %65, %64 in 1 : vector<2x2x64xf32>, vector<2x8x64xf32> -> vector<2x10x64xf32>
    %67 = vector.extract_strided_slice %66 {offsets = [0, 0, 0], sizes = [2, 8, 64], strides = [1, 1, 1]} : vector<2x10x64xf32> to vector<2x8x64xf32>
    %68 = vector.extract_strided_slice %66 {offsets = [0, 1, 0], sizes = [2, 8, 64], strides = [1, 1, 1]} : vector<2x10x64xf32> to vector<2x8x64xf32>
    %69 = vector.extract_strided_slice %66 {offsets = [0, 2, 0], sizes = [2, 8, 64], strides = [1, 1, 1]} : vector<2x10x64xf32> to vector<2x8x64xf32>
    %70 = tpu.concatenate %67, %68, %69 in 2 : vector<2x8x64xf32>, vector<2x8x64xf32>, vector<2x8x64xf32> -> vector<2x8x192xf32>
    %71 = vector.shape_cast %70 : vector<2x8x192xf32> to vector<16x192xf32>
    %c0_38 = arith.constant 0 : index
    %c0_39 = arith.constant 0 : index
    %72 = vector.load %arg11[%c0_38, %c0_39] : memref<192x128xf32, #tpu.memory_space<vmem>>, vector<192x128xf32>
    %cst_40 = arith.constant dense<0.000000e+00> : vector<16x128xf32>
    %73 = tpu.matmul %71, %72, %cst_40 {dimension_numbers = #tpu.dot_dimension_numbers<[1], [0], [0], [1], [0, 0, 1, 1], [], []>} : vector<16x192xf32>, vector<192x128xf32>, vector<16x128xf32> -> vector<16x128xf32>
    %c0_41 = arith.constant 0 : index
    %c0_42 = arith.constant 0 : index
    %74 = vector.load %arg12[%c0_41, %c0_42] : memref<1x128xf32, #tpu.memory_space<vmem>>, vector<1x128xf32>
    %75 = vector.broadcast %74 : vector<1x128xf32> to vector<16x128xf32>
    %76 = arith.addf %73, %75 : vector<16x128xf32>
    %77 = vector.extract_strided_slice %76 {offsets = [0, 0], sizes = [16, 64], strides = [1, 1]} : vector<16x128xf32> to vector<16x64xf32>
    %78 = vector.extract_strided_slice %76 {offsets = [0, 64], sizes = [16, 64], strides = [1, 1]} : vector<16x128xf32> to vector<16x64xf32>
    %79 = arith.negf %78 : vector<16x64xf32>
    %80 = math.exp %79 : vector<16x64xf32>
    %cst_43 = arith.constant 1.000000e+00 : f32
    %81 = vector.broadcast %cst_43 : f32 to vector<16x64xf32>
    %82 = arith.addf %81, %80 : vector<16x64xf32>
    %83 = arith.divf %81, %82 : vector<16x64xf32>
    %84 = arith.mulf %77, %83 : vector<16x64xf32>
    %c0_44 = arith.constant 0 : index
    %c0_45 = arith.constant 0 : index
    %85 = vector.load %arg13[%c0_44, %c0_45] : memref<64x32xf32, #tpu.memory_space<vmem>>, vector<64x32xf32>
    %cst_46 = arith.constant dense<0.000000e+00> : vector<16x32xf32>
    %86 = tpu.matmul %84, %85, %cst_46 {dimension_numbers = #tpu.dot_dimension_numbers<[1], [0], [0], [1], [0, 0, 1, 1], [], []>} : vector<16x64xf32>, vector<64x32xf32>, vector<16x32xf32> -> vector<16x32xf32>
    %c0_47 = arith.constant 0 : index
    %c0_48 = arith.constant 0 : index
    %87 = vector.load %arg14[%c0_47, %c0_48] : memref<1x32xf32, #tpu.memory_space<vmem>>, vector<1x32xf32>
    %88 = vector.broadcast %87 : vector<1x32xf32> to vector<16x32xf32>
    %89 = arith.addf %86, %88 : vector<16x32xf32>
    %90 = arith.addf %89, %1 : vector<16x32xf32>
    %cst_49 = arith.constant 0.707106769 : f32
    %91 = vector.broadcast %cst_49 : f32 to vector<16x32xf32>
    %92 = arith.mulf %90, %91 : vector<16x32xf32>
    %93 = vector.shape_cast %92 : vector<16x32xf32> to vector<2x8x32xf32>
    "tpu.trace_start"() <{level = 10 : i32, message = "bte,bse->bts"}> : () -> ()
    %cst_50 = arith.constant dense<0.000000e+00> : vector<2x8x16xf32>
    %94 = tpu.matmul %93, %2, %cst_50 {dimension_numbers = #tpu.dot_dimension_numbers<[2], [2], [1], [1], [0, 0, 0, 1, 1, 1], [0], [0]>} : vector<2x8x32xf32>, vector<2x16x32xf32>, vector<2x8x16xf32> -> vector<2x8x16xf32>
    "tpu.trace_stop"() : () -> ()
    %cst_51 = arith.constant dense<0xFF800000> : vector<2x8xf32>
    %95 = vector.multi_reduction <maximumf>, %94, %cst_51 [2] : vector<2x8x16xf32> to vector<2x8xf32>
    %96 = vector.shape_cast %95 : vector<2x8xf32> to vector<2x8x1xf32>
    %97 = vector.broadcast %96 : vector<2x8x1xf32> to vector<2x8x16xf32>
    %98 = arith.subf %94, %97 : vector<2x8x16xf32>
    %99 = math.exp %98 : vector<2x8x16xf32>
    %cst_52 = arith.constant dense<0.000000e+00> : vector<2x8xf32>
    %100 = vector.multi_reduction <add>, %99, %cst_52 [2] : vector<2x8x16xf32> to vector<2x8xf32>
    %101 = vector.shape_cast %100 : vector<2x8xf32> to vector<2x8x1xf32>
    %102 = vector.broadcast %101 : vector<2x8x1xf32> to vector<2x8x16xf32>
    %103 = arith.divf %99, %102 : vector<2x8x16xf32>
    "tpu.trace_start"() <{level = 10 : i32, message = "bts,bse->bte"}> : () -> ()
    %cst_53 = arith.constant dense<0.000000e+00> : vector<2x8x32xf32>
    %104 = tpu.matmul %103, %3, %cst_53 {dimension_numbers = #tpu.dot_dimension_numbers<[2], [1], [1], [2], [0, 0, 0, 1, 1, 2], [0], [0]>} : vector<2x8x16xf32>, vector<2x16x32xf32>, vector<2x8x32xf32> -> vector<2x8x32xf32>
    "tpu.trace_stop"() : () -> ()
    %cst_54 = arith.constant 4.000000e+00 : f32
    %105 = vector.broadcast %cst_54 : f32 to vector<2x8x32xf32>
    %106 = arith.mulf %104, %105 : vector<2x8x32xf32>
    %107 = vector.shape_cast %106 : vector<2x8x32xf32> to vector<16x32xf32>
    %c0_55 = arith.constant 0 : index
    %c0_56 = arith.constant 0 : index
    %108 = vector.load %arg15[%c0_55, %c0_56] : memref<32x64xf32, #tpu.memory_space<vmem>>, vector<32x64xf32>
    %cst_57 = arith.constant dense<0.000000e+00> : vector<16x64xf32>
    %109 = tpu.matmul %107, %108, %cst_57 {dimension_numbers = #tpu.dot_dimension_numbers<[1], [0], [0], [1], [0, 0, 1, 1], [], []>} : vector<16x32xf32>, vector<32x64xf32>, vector<16x64xf32> -> vector<16x64xf32>
    %c0_58 = arith.constant 0 : index
    %c0_59 = arith.constant 0 : index
    %110 = vector.load %arg16[%c0_58, %c0_59] : memref<1x64xf32, #tpu.memory_space<vmem>>, vector<1x64xf32>
    %111 = vector.broadcast %110 : vector<1x64xf32> to vector<16x64xf32>
    %112 = arith.addf %109, %111 : vector<16x64xf32>
    %113 = arith.addf %112, %84 : vector<16x64xf32>
    %cst_60 = arith.constant 0.707106769 : f32
    %114 = vector.broadcast %cst_60 : f32 to vector<16x64xf32>
    %115 = arith.mulf %113, %114 : vector<16x64xf32>
    %116 = arith.addf %115, %63 : vector<16x64xf32>
    %cst_61 = arith.constant 0.707106769 : f32
    %117 = vector.broadcast %cst_61 : f32 to vector<16x64xf32>
    %118 = arith.mulf %116, %117 : vector<16x64xf32>
    %c0_62 = arith.constant 0 : index
    %c0_63 = arith.constant 0 : index
    %119 = vector.load %arg17[%c0_62, %c0_63] : memref<64x32xf32, #tpu.memory_space<vmem>>, vector<64x32xf32>
    %cst_64 = arith.constant dense<0.000000e+00> : vector<16x32xf32>
    %120 = tpu.matmul %118, %119, %cst_64 {dimension_numbers = #tpu.dot_dimension_numbers<[1], [0], [0], [1], [0, 0, 1, 1], [], []>} : vector<16x64xf32>, vector<64x32xf32>, vector<16x32xf32> -> vector<16x32xf32>
    %c0_65 = arith.constant 0 : index
    %c0_66 = arith.constant 0 : index
    %121 = vector.load %arg18[%c0_65, %c0_66] : memref<1x32xf32, #tpu.memory_space<vmem>>, vector<1x32xf32>
    %122 = vector.broadcast %121 : vector<1x32xf32> to vector<16x32xf32>
    %123 = arith.addf %120, %122 : vector<16x32xf32>
    %c0_67 = arith.constant 0 : index
    %c0_68 = arith.constant 0 : index
    %124 = vector.load %arg19[%c0_67, %c0_68] : memref<32x128xf32, #tpu.memory_space<vmem>>, vector<32x128xf32>
    %cst_69 = arith.constant dense<0.000000e+00> : vector<16x128xf32>
    %125 = tpu.matmul %123, %124, %cst_69 {dimension_numbers = #tpu.dot_dimension_numbers<[1], [0], [0], [1], [0, 0, 1, 1], [], []>} : vector<16x32xf32>, vector<32x128xf32>, vector<16x128xf32> -> vector<16x128xf32>
    %c0_70 = arith.constant 0 : index
    %c0_71 = arith.constant 0 : index
    %126 = vector.load %arg20[%c0_70, %c0_71] : memref<1x128xf32, #tpu.memory_space<vmem>>, vector<1x128xf32>
    %127 = vector.broadcast %126 : vector<1x128xf32> to vector<16x128xf32>
    %128 = arith.addf %125, %127 : vector<16x128xf32>
    %129 = vector.shape_cast %128 : vector<16x128xf32> to vector<2x8x128xf32>
    %c0_72 = arith.constant 0 : index
    %c0_73 = arith.constant 0 : index
    %c0_74 = arith.constant 0 : index
    %130 = vector.load %arg21[%c0_72, %c0_73, %c0_74] : memref<2x8x128xf32, #tpu.memory_space<vmem>>, vector<2x8x128xf32>
    tpu.vector_store %arg21[%c0_72, %c0_73, %c0_74], %129 {strides = array<i32>} : memref<2x8x128xf32, #tpu.memory_space<vmem>>, vector<2x8x128xf32>,
    return
  }
}

</mosaic_0001>

<llo_original>
// kernel: convs2s_forward.2
$region0: #{convs2s_forward.2}
  #allocation0 [shape = 'u32[]', space=smem, size = 0x4, offset = 0x4, fixed_abs, tag = 'smem constant byte address 0x4 - core index']
  #allocation1 [shape = 'u32[144,128]{1,0:T(1,128)}', space=vmem, size = 0x12000, scoped, tag = 'internal scratch']
  %s0 = inlined_call_operand.vmem [shape: f32[2,16,32], index: 0, kind: input, shape index: {}]
  %s1 = inlined_call_operand.vmem [shape: f32[32,64], index: 1, kind: input, shape index: {}]
  %s2 = inlined_call_operand.vmem [shape: f32[1,64], index: 2, kind: input, shape index: {}]
  %s3 = inlined_call_operand.vmem [shape: f32[192,128], index: 3, kind: input, shape index: {}]
  %s4 = inlined_call_operand.vmem [shape: f32[1,128], index: 4, kind: input, shape index: {}]
  %s5 = inlined_call_operand.vmem [shape: f32[192,128], index: 5, kind: input, shape index: {}]
  %s6 = inlined_call_operand.vmem [shape: f32[1,128], index: 6, kind: input, shape index: {}]
  %s7 = inlined_call_operand.vmem [shape: f32[64,32], index: 7, kind: input, shape index: {}]
  %s8 = inlined_call_operand.vmem [shape: f32[1,32], index: 8, kind: input, shape index: {}]
  %s9 = inlined_call_operand.vmem [shape: f32[2,16,32], index: 9, kind: output, shape index: {0}]
  %s10 = inlined_call_operand.vmem [shape: f32[2,16,32], index: 10, kind: output, shape index: {1}]
  %11 = xla_tuple %s9, %s10
  %s12 = sld [smem:[#allocation0]]
  $region54: #{convs2s_forward.2} parent=0
    _
  %s14 = ssub.s32 1, %s12
  %s15 = scalar_select 0, %s14, %s12
  // Predicated region
  $region2: #{convs2s_forward.2} parent=0 // pred_check
    _
  $region3: #{convs2s_forward.2} parent=0 // pred_check_branch
    %17 = sbr.rel (0) target = $region5
  $region4: #{convs2s_forward.2} parent=0 // pred_region
    _
  $region5: #{convs2s_forward.2} parent=0 // pred_fallthru
    _
  // Predicated region
  $region6: #{convs2s_forward.2} parent=0 // pred_check
    _
  $region7: #{convs2s_forward.2} parent=0 // pred_check_branch
    %19 = sbr.rel (0) target = $region9
  $region8: #{convs2s_forward.2} parent=0 // pred_region
    _
  $region9: #{convs2s_forward.2} parent=0 // pred_fallthru
    _
  // Predicated region
  $region10: #{convs2s_forward.2} parent=0 // pred_check
    _
  $region11: #{convs2s_forward.2} parent=0 // pred_check_branch
    %21 = sbr.rel (0) target = $region13
  $region12: #{convs2s_forward.2} parent=0 // pred_region
    _
  $region13: #{convs2s_forward.2} parent=0 // pred_fallthru
    _
  // Predicated region
  $region14: #{convs2s_forward.2} parent=0 // pred_check
    _
  $region15: #{convs2s_forward.2} parent=0 // pred_check_branch
    %23 = sbr.rel (0) target = $region17
  $region16: #{convs2s_forward.2} parent=0 // pred_region
    _
  $region17: #{convs2s_forward.2} parent=0 // pred_fallthru
    _
  // Predicated region
  $region18: #{convs2s_forward.2} parent=0 // pred_check
    _
  $region19: #{convs2s_forward.2} parent=0 // pred_check_branch
    %25 = sbr.rel (0) target = $region21
  $region20: #{convs2s_forward.2} parent=0 // pred_region
    _
  $region21: #{convs2s_forward.2} parent=0 // pred_fallthru
    _
  // Predicated region
  $region22: #{convs2s_forward.2} parent=0 // pred_check
    _
  $region23: #{convs2s_forward.2} parent=0 // pred_check_branch
    %27 = sbr.rel (0) target = $region25
  $region24: #{convs2s_forward.2} parent=0 // pred_region
    _
  $region25: #{convs2s_forward.2} parent=0 // pred_fallthru
    _
  // Predicated region
  $region26: #{convs2s_forward.2} parent=0 // pred_check
    _
  $region27: #{convs2s_forward.2} parent=0 // pred_check_branch
    %29 = sbr.rel (0) target = $region29
  $region28: #{convs2s_forward.2} parent=0 // pred_region
    _
  $region29: #{convs2s_forward.2} parent=0 // pred_fallthru
    _
  // Predicated region
  $region30: #{convs2s_forward.2} parent=0 // pred_check
    _
  $region31: #{convs2s_forward.2} parent=0 // pred_check_branch
    %31 = sbr.rel (0) target = $region33
  $region32: #{convs2s_forward.2} parent=0 // pred_region
    _
  $region33: #{convs2s_forward.2} parent=0 // pred_fallthru
    _
  // Predicated region
  $region34: #{convs2s_forward.2} parent=0 // pred_check
    _
  $region35: #{convs2s_forward.2} parent=0 // pred_check_branch
    %33 = sbr.rel (0) target = $region37
  $region36: #{convs2s_forward.2} parent=0 // pred_region
    _
  $region37: #{convs2s_forward.2} parent=0 // pred_fallthru
    _
  %v34 = vld [vmem:[%s0] sm:$0xff]
  %v35 = vld [vmem:[%s0 + $0x8] sm:$0xff]
  %v36 = vld [vmem:[%s0 + $0x10] sm:$0xff]
  %v37 = vld [vmem:[%s0 + $0x18] sm:$0xff]
  %v38 = vld [vmem:[%s1] sm:$0xff]
  %v39 = vld [vmem:[%s1 + $0x8] sm:$0xff]
  %v40 = vld [vmem:[%s1 + $0x10] sm:$0xff]
  %v41 = vld [vmem:[%s1 + $0x18] sm:$0xff]
  %v42 = vld [vmem:[%s2] sm:$0x1]
  %v44 = vlaneseq
  %v45 = vshrl.u32 %v44, 7
  %v46 = vsub.s32 0, %v45
  %v47 = vrot.slane %v42, %v46
  %vm49 = vcmask 261120
  %v51 = vsel %vm49, %v34, 0
  %v54 = vsel %vm49, %v35, 0
  %v57 = vsel %vm49, %v36, 0
  %v60 = vsel %vm49, %v37, 0
  %62 = vmatprep.subr.mxu0 0.0
  %63 = vmatpush1.msra.mxu0 %v38
  %64 = vmatprep.subr.mxu0 0.0
  %65 = vmatpush1.msra.mxu0 %v39
  %66 = vmatprep.subr.mxu0 0.0
  %67 = vmatpush1.msra.mxu0 %v40
  %68 = vmatprep.subr.mxu0 0.0
  %69 = vmatpush1.msra.mxu0 %v41
  %70 = vmatprep.subr.mxu0 0.0
  %71 = vmatpush1.msra.mxu0 0.0
  %72 = vmatprep.subr.mxu0 0.0
  %73 = vmatpush1.msra.mxu0 0.0
  %74 = vmatprep.subr.mxu0 0.0
  %75 = vmatpush1.msra.mxu0 0.0
  %76 = vmatprep.subr.mxu0 0.0
  %77 = vmatpush1.msra.mxu0 0.0
  %78 = vmatprep.subr.mxu0 0.0
  %79 = vmatpush1.msra.mxu0 0.0
  %80 = vmatprep.subr.mxu0 0.0
  %81 = vmatpush1.msra.mxu0 0.0
  %82 = vmatprep.subr.mxu0 0.0
  %83 = vmatpush1.msra.mxu0 0.0
  %84 = vmatprep.subr.mxu0 0.0
  %85 = vmatpush1.msra.mxu0 0.0
  %86 = vmatprep.subr.mxu0 0.0
  %87 = vmatpush1.msra.mxu0 0.0
  %88 = vmatprep.subr.mxu0 0.0
  %89 = vmatpush1.msra.mxu0 0.0
  %90 = vmatprep.subr.mxu0 0.0
  %91 = vmatpush1.msra.mxu0 0.0
  %92 = vmatprep.subr.mxu0 0.0
  %93 = vmatpush1.msra.mxu0 0.0
  %94 = vmatprep.subr.mxu0 0.0
  %95 = vmatpush1.msra.mxu0 0.0
  %96 = vmatprep.subr.mxu0 0.0
  %97 = vmatpush1.msra.mxu0 0.0
  %98 = vmatprep.subr.mxu0 0.0
  %99 = vmatpush1.msra.mxu0 0.0
  %100 = vmatprep.subr.mxu0 0.0
  %101 = vmatpush1.msra.mxu0 0.0
  %102 = vmatprep.subr.mxu0 0.0
  %103 = vmatpush1.msra.mxu0 0.0
  %104 = vmatprep.subr.mxu0 0.0
  %105 = vmatpush1.msra.mxu0 0.0
  %106 = vmatprep.subr.mxu0 0.0
  %107 = vmatpush1.msra.mxu0 0.0
  %108 = vmatprep.subr.mxu0 0.0
  %109 = vmatpush1.msra.mxu0 0.0
  %110 = vmatprep.subr.mxu0 0.0
  %111 = vmatpush1.msra.mxu0 0.0
  %112 = vmatprep.subr.mxu0 0.0
  %113 = vmatpush1.msra.mxu0 0.0
  %114 = vmatprep.subr.mxu0 0.0
  %115 = vmatpush1.msra.mxu0 0.0
  %116 = vmatprep.subr.mxu0 0.0
  %117 = vmatpush1.msra.mxu0 0.0
  %118 = vmatprep.subr.mxu0 0.0
  %119 = vmatpush1.msra.mxu0 0.0
  %120 = vmatprep.subr.mxu0 0.0
  %121 = vmatpush1.msra.mxu0 0.0
  %122 = vmatprep.subr.mxu0 0.0
  %123 = vmatpush1.msra.mxu0 0.0
  %124 = vmatprep.subr.mxu0 0.0
  %125 = vmatpush1.msra.mxu0 0.0
  %126 = vmatprep.mubr.f32.mxu0 0.0
  %127 = vmatmul.mubr.f32.gmra.mrb[0].mxu0 %v51
  %v128 = vpop.f32.mrb[0].mxu0
  %v129 = vadd.f32 %v47, %v128
  %v130 = vpop.f32.mrb[0].mxu0
  %131 = vmatprep.mubr.f32.mxu0 0.0
  %132 = vmatmul.mubr.f32.gmra.mrb[0].mxu0 %v54
  %v133 = vpop.f32.mrb[0].mxu0
  %v134 = vadd.f32 %v47, %v133
  %v135 = vpop.f32.mrb[0].mxu0
  %136 = vmatprep.mubr.f32.mxu0 0.0
  %137 = vmatmul.mubr.f32.gmra.mrb[0].mxu0 %v57
  %v138 = vpop.f32.mrb[0].mxu0
  %v139 = vadd.f32 %v47, %v138
  %v140 = vpop.f32.mrb[0].mxu0
  %141 = vmatprep.mubr.f32.mxu0 0.0
  %142 = vmatmul.mubr.f32.gmra.mrb[0].mxu0 %v60
  %v143 = vpop.f32.mrb[0].mxu0
  %v144 = vadd.f32 %v47, %v143
  %v145 = vpop.f32.mrb[0].mxu0
  %146 = vdwg.mxu0
  %vm151 = vcmask 1040384
  %v152 = vrot.slane %v129, 7
  %v153 = vrot.slane %v134, 7
  %v154 = vsel %vm151, %v152, %v153
  %v155 = vrot.slane %v139, 7
  %v156 = vrot.slane %v144, 7
  %v157 = vsel %vm151, %v155, %v156
  %v164 = vsel %vm151, 0.0, %v152
  %v165 = vsel %vm151, 0.0, %v155
  %v166 = vsel %vm151, %v153, 0.0
  %v167 = vsel %vm151, %v156, 0.0
  %vm172 = vcmask 1046528
  %v173 = vrot.slane %v164, 1
  %v174 = vrot.slane %v154, 1
  %v175 = vsel %vm172, %v173, %v174
  %v176 = vrot.slane %v166, 1
  %v177 = vsel %vm172, %v174, %v176
  %v178 = vrot.slane %v165, 1
  %v179 = vrot.slane %v157, 1
  %v180 = vsel %vm172, %v178, %v179
  %v181 = vrot.slane %v167, 1
  %v182 = vsel %vm172, %v179, %v181
  %183 = vrot.lane.b32.xlu0 %v175, 64
  %v184 = vpop.permute.xlu0 %183
  %185 = vrot.lane.b32.xlu0 %v177, 64
  %v186 = vpop.permute.xlu0 %185
  %187 = vrot.lane.b32.xlu0 %v180, 64
  %v188 = vpop.permute.xlu0 %187
  %189 = vrot.lane.b32.xlu0 %v182, 64
  %v190 = vpop.permute.xlu0 %189
  %vm195 = vcmask 1045504
  %v196 = vrot.slane %v164, 2
  %v197 = vrot.slane %v154, 2
  %v198 = vsel %vm195, %v196, %v197
  %v199 = vrot.slane %v166, 2
  %v200 = vsel %vm195, %v197, %v199
  %v201 = vrot.slane %v165, 2
  %v202 = vrot.slane %v157, 2
  %v203 = vsel %vm195, %v201, %v202
  %v204 = vrot.slane %v167, 2
  %v205 = vsel %vm195, %v202, %v204
  %vm206 = vcmask 523264
  %v207 = vsel %vm206, %v164, %v184
  %v208 = vsel %vm206, %v154, %v186
  %v209 = vsel %vm206, %v165, %v188
  %v210 = vsel %vm206, %v157, %v190
  %v211 = vld [vmem:[%s3] sm:$0xff]
  %v212 = vld [vmem:[%s3 + $0x8] sm:$0xff]
  %v213 = vld [vmem:[%s3 + $0x10] sm:$0xff]
  %v214 = vld [vmem:[%s3 + $0x18] sm:$0xff]
  %v215 = vld [vmem:[%s3 + $0x20] sm:$0xff]
  %v216 = vld [vmem:[%s3 + $0x28] sm:$0xff]
  %v217 = vld [vmem:[%s3 + $0x30] sm:$0xff]
  %v218 = vld [vmem:[%s3 + $0x38] sm:$0xff]
  %v219 = vld [vmem:[%s3 + $0x40] sm:$0xff]
  %v220 = vld [vmem:[%s3 + $0x48] sm:$0xff]
  %v221 = vld [vmem:[%s3 + $0x50] sm:$0xff]
  %v222 = vld [vmem:[%s3 + $0x58] sm:$0xff]
  %v223 = vld [vmem:[%s3 + $0x60] sm:$0xff]
  %v224 = vld [vmem:[%s3 + $0x68] sm:$0xff]
  %v225 = vld [vmem:[%s3 + $0x70] sm:$0xff]
  %v226 = vld [vmem:[%s3 + $0x78] sm:$0xff]
  %v227 = vld [vmem:[%s3 + $0x80] sm:$0xff]
  %v228 = vld [vmem:[%s3 + $0x88] sm:$0xff]
  %v229 = vld [vmem:[%s3 + $0x90] sm:$0xff]
  %v230 = vld [vmem:[%s3 + $0x98] sm:$0xff]
  %v231 = vld [vmem:[%s3 + $0xa0] sm:$0xff]
  %v232 = vld [vmem:[%s3 + $0xa8] sm:$0xff]
  %v233 = vld [vmem:[%s3 + $0xb0] sm:$0xff]
  %v234 = vld [vmem:[%s3 + $0xb8] sm:$0xff]
  %v235 = vld [vmem:[%s4] sm:$0x1]
  %v237 = vlaneseq
  %v238 = vshrl.u32 %v237, 7
  %v239 = vsub.s32 0, %v238
  %v240 = vrot.slane %v235, %v239
  %v242 = vsel %vm206, %v198, 0
  %v244 = vsel %vm206, %v200, 0
  %v246 = vsel %vm206, %v203, 0
  %v248 = vsel %vm206, %v205, 0
  %250 = vmatprep.subr.mxu0 0.0
  %251 = vmatpush1.msra.mxu0 %v211
  %252 = vmatprep.subr.mxu0 0.0
  %253 = vmatpush1.msra.mxu0 %v212
  %254 = vmatprep.subr.mxu0 0.0
  %255 = vmatpush1.msra.mxu0 %v213
  %256 = vmatprep.subr.mxu0 0.0
  %257 = vmatpush1.msra.mxu0 %v214
  %258 = vmatprep.subr.mxu0 0.0
  %259 = vmatpush1.msra.mxu0 %v215
  %260 = vmatprep.subr.mxu0 0.0
  %261 = vmatpush1.msra.mxu0 %v216
  %262 = vmatprep.subr.mxu0 0.0
  %263 = vmatpush1.msra.mxu0 %v217
  %264 = vmatprep.subr.mxu0 0.0
  %265 = vmatpush1.msra.mxu0 %v218
  %266 = vmatprep.subr.mxu0 0.0
  %267 = vmatpush1.msra.mxu0 %v219
  %268 = vmatprep.subr.mxu0 0.0
  %269 = vmatpush1.msra.mxu0 %v220
  %270 = vmatprep.subr.mxu0 0.0
  %271 = vmatpush1.msra.mxu0 %v221
  %272 = vmatprep.subr.mxu0 0.0
  %273 = vmatpush1.msra.mxu0 %v222
  %274 = vmatprep.subr.mxu0 0.0
  %275 = vmatpush1.msra.mxu0 %v223
  %276 = vmatprep.subr.mxu0 0.0
  %277 = vmatpush1.msra.mxu0 %v224
  %278 = vmatprep.subr.mxu0 0.0
  %279 = vmatpush1.msra.mxu0 %v225
  %280 = vmatprep.subr.mxu0 0.0
  %281 = vmatpush1.msra.mxu0 %v226
  %282 = vmatprep.subr.mxu0 0.0
  %283 = vmatpush1.msra.mxu0 %v227
  %284 = vmatprep.subr.mxu0 0.0
  %285 = vmatpush1.msra.mxu0 %v228
  %286 = vmatprep.subr.mxu0 0.0
  %287 = vmatpush1.msra.mxu0 %v229
  %288 = vmatprep.subr.mxu0 0.0
  %289 = vmatpush1.msra.mxu0 %v230
  %290 = vmatprep.subr.mxu0 0.0
  %291 = vmatpush1.msra.mxu0 %v231
  %292 = vmatprep.subr.mxu0 0.0
  %293 = vmatpush1.msra.mxu0 %v232
  %294 = vmatprep.subr.mxu0 0.0
  %295 = vmatpush1.msra.mxu0 %v233
  %296 = vmatprep.subr.mxu0 0.0
  %297 = vmatpush1.msra.mxu0 %v234
  %298 = vmatprep.subr.mxu0 0.0
  %299 = vmatpush1.msra.mxu0 0.0
  %300 = vmatprep.subr.mxu0 0.0
  %301 = vmatpush1.msra.mxu0 0.0
  %302 = vmatprep.subr.mxu0 0.0
  %303 = vmatpush1.msra.mxu0 0.0
  %304 = vmatprep.subr.mxu0 0.0
  %305 = vmatpush1.msra.mxu0 0.0
  %306 = vmatprep.subr.mxu0 0.0
  %307 = vmatpush1.msra.mxu0 0.0
  %308 = vmatprep.subr.mxu0 0.0
  %309 = vmatpush1.msra.mxu0 0.0
  %310 = vmatprep.subr.mxu0 0.0
  %311 = vmatpush1.msra.mxu0 0.0
  %312 = vmatprep.subr.mxu0 0.0
  %313 = vmatpush1.msra.mxu0 0.0
  %314 = vmatprep.mubr.f32.mxu0 %v242
  %315 = vmatmul.mubr.f32.gmra.mrb[0].mxu0 %v207
  %v316 = vpop.f32.mrb[0].mxu0
  %v317 = vadd.f32 %v240, %v316
  %v318 = vpop.f32.mrb[0].mxu0
  %319 = vmatprep.mubr.f32.mxu0 %v244
  %320 = vmatmul.mubr.f32.gmra.mrb[0].mxu0 %v208
  %v321 = vpop.f32.mrb[0].mxu0
  %v322 = vadd.f32 %v240, %v321
  %v323 = vpop.f32.mrb[0].mxu0
  %324 = vmatprep.mubr.f32.mxu0 %v246
  %325 = vmatmul.mubr.f32.gmra.mrb[0].mxu0 %v209
  %v326 = vpop.f32.mrb[0].mxu0
  %v327 = vadd.f32 %v240, %v326
  %v328 = vpop.f32.mrb[0].mxu0
  %329 = vmatprep.mubr.f32.mxu0 %v248
  %330 = vmatmul.mubr.f32.gmra.mrb[0].mxu0 %v210
  %v331 = vpop.f32.mrb[0].mxu0
  %v332 = vadd.f32 %v240, %v331
  %v333 = vpop.f32.mrb[0].mxu0
  %334 = vdwg.mxu0
  %v335 = vxor.u32 %v317, 2147483648
  %v336 = vxor.u32 %v322, 2147483648
  %v337 = vxor.u32 %v327, 2147483648
  %v338 = vxor.u32 %v332, 2147483648
  %v339 = vmul.f32 %v335, 1.442695
  %v340 = vpow.pop %v339
  %v341 = vmul.f32 %v336, 1.442695
  %v342 = vpow.pop %v341
  %v343 = vmul.f32 %v337, 1.442695
  %v344 = vpow.pop %v343
  %v345 = vmul.f32 %v338, 1.442695
  %v346 = vpow.pop %v345
  %v347 = vadd.f32 %v340, 1.0
  %v348 = vadd.f32 %v342, 1.0
  %v349 = vadd.f32 %v344, 1.0
  %v350 = vadd.f32 %v346, 1.0
  %v351 = vrcp.pop %v347
  %v352 = vmul.f32 1.0, %v351
  %v353 = vrcp.pop %v348
  %v354 = vmul.f32 1.0, %v353
  %v355 = vrcp.pop %v349
  %v356 = vmul.f32 1.0, %v355
  %v357 = vrcp.pop %v350
  %v358 = vmul.f32 1.0, %v357
  %363 = vrot.lane.b32.xlu0 %v352, 64
  %v364 = vpop.permute.xlu0 %363
  %365 = vrot.lane.b32.xlu0 %v354, 64
  %v366 = vpop.permute.xlu0 %365
  %367 = vrot.lane.b32.xlu0 %v356, 64
  %v368 = vpop.permute.xlu0 %367
  %369 = vrot.lane.b32.xlu0 %v358, 64
  %v370 = vpop.permute.xlu0 %369
  %v375 = vmul.f32 %v317, %v364
  %v376 = vmul.f32 %v322, %v366
  %v377 = vmul.f32 %v327, %v368
  %v378 = vmul.f32 %v332, %v370
  %v379 = vadd.f32 %v375, %v129
  %v380 = vadd.f32 %v376, %v134
  %v381 = vadd.f32 %v377, %v139
  %v382 = vadd.f32 %v378, %v144
  %v383 = vmul.f32 %v379, 0.70710677
  %v384 = vmul.f32 %v380, 0.70710677
  %v385 = vmul.f32 %v381, 0.70710677
  %v386 = vmul.f32 %v382, 0.70710677
  %v391 = vrot.slane %v383, 7
  %v392 = vrot.slane %v384, 7
  %v393 = vsel %vm151, %v391, %v392
  %v394 = vrot.slane %v385, 7
  %v395 = vrot.slane %v386, 7
  %v396 = vsel %vm151, %v394, %v395
  %v403 = vsel %vm151, 0.0, %v391
  %v404 = vsel %vm151, 0.0, %v394
  %v405 = vsel %vm151, %v392, 0.0
  %v406 = vsel %vm151, %v395, 0.0
  %v411 = vrot.slane %v403, 1
  %v412 = vrot.slane %v393, 1
  %v413 = vsel %vm172, %v411, %v412
  %v414 = vrot.slane %v405, 1
  %v415 = vsel %vm172, %v412, %v414
  %v416 = vrot.slane %v404, 1
  %v417 = vrot.slane %v396, 1
  %v418 = vsel %vm172, %v416, %v417
  %v419 = vrot.slane %v406, 1
  %v420 = vsel %vm172, %v417, %v419
  %421 = vrot.lane.b32.xlu0 %v413, 64
  %v422 = vpop.permute.xlu0 %421
  %423 = vrot.lane.b32.xlu0 %v415, 64
  %v424 = vpop.permute.xlu0 %423
  %425 = vrot.lane.b32.xlu0 %v418, 64
  %v426 = vpop.permute.xlu0 %425
  %427 = vrot.lane.b32.xlu0 %v420, 64
  %v428 = vpop.permute.xlu0 %427
  %v433 = vrot.slane %v403, 2
  %v434 = vrot.slane %v393, 2
  %v435 = vsel %vm195, %v433, %v434
  %v436 = vrot.slane %v405, 2
  %v437 = vsel %vm195, %v434, %v436
  %v438 = vrot.slane %v404, 2
  %v439 = vrot.slane %v396, 2
  %v440 = vsel %vm195, %v438, %v439
  %v441 = vrot.slane %v406, 2
  %v442 = vsel %vm195, %v439, %v441
  %v443 = vsel %vm206, %v403, %v422
  %v444 = vsel %vm206, %v393, %v424
  %v445 = vsel %vm206, %v404, %v426
  %v446 = vsel %vm206, %v396, %v428
  %v447 = vld [vmem:[%s5] sm:$0xff]
  %v448 = vld [vmem:[%s5 + $0x8] sm:$0xff]
  %v449 = vld [vmem:[%s5 + $0x10] sm:$0xff]
  %v450 = vld [vmem:[%s5 + $0x18] sm:$0xff]
  %v451 = vld [vmem:[%s5 + $0x20] sm:$0xff]
  %v452 = vld [vmem:[%s5 + $0x28] sm:$0xff]
  %v453 = vld [vmem:[%s5 + $0x30] sm:$0xff]
  %v454 = vld [vmem:[%s5 + $0x38] sm:$0xff]
  %v455 = vld [vmem:[%s5 + $0x40] sm:$0xff]
  %v456 = vld [vmem:[%s5 + $0x48] sm:$0xff]
  %v457 = vld [vmem:[%s5 + $0x50] sm:$0xff]
  %v458 = vld [vmem:[%s5 + $0x58] sm:$0xff]
  %v459 = vld [vmem:[%s5 + $0x60] sm:$0xff]
  %v460 = vld [vmem:[%s5 + $0x68] sm:$0xff]
  %v461 = vld [vmem:[%s5 + $0x70] sm:$0xff]
  %v462 = vld [vmem:[%s5 + $0x78] sm:$0xff]
  %v463 = vld [vmem:[%s5 + $0x80] sm:$0xff]
  %v464 = vld [vmem:[%s5 + $0x88] sm:$0xff]
  %v465 = vld [vmem:[%s5 + $0x90] sm:$0xff]
  %v466 = vld [vmem:[%s5 + $0x98] sm:$0xff]
  %v467 = vld [vmem:[%s5 + $0xa0] sm:$0xff]
  %v468 = vld [vmem:[%s5 + $0xa8] sm:$0xff]
  %v469 = vld [vmem:[%s5 + $0xb0] sm:$0xff]
  %v470 = vld [vmem:[%s5 + $0xb8] sm:$0xff]
  %v471 = vld [vmem:[%s6] sm:$0x1]
  %v473 = vlaneseq
  %v474 = vshrl.u32 %v473, 7
  %v475 = vsub.s32 0, %v474
  %v476 = vrot.slane %v471, %v475
  %v478 = vsel %vm206, %v435, 0
  %v480 = vsel %vm206, %v437, 0
  %v482 = vsel %vm206, %v440, 0
  %v484 = vsel %vm206, %v442, 0
  %486 = vmatprep.subr.mxu0 0.0
  %487 = vmatpush1.msra.mxu0 %v447
  %488 = vmatprep.subr.mxu0 0.0
  %489 = vmatpush1.msra.mxu0 %v448
  %490 = vmatprep.subr.mxu0 0.0
  %491 = vmatpush1.msra.mxu0 %v449
  %492 = vmatprep.subr.mxu0 0.0
  %493 = vmatpush1.msra.mxu0 %v450
  %494 = vmatprep.subr.mxu0 0.0
  %495 = vmatpush1.msra.mxu0 %v451
  %496 = vmatprep.subr.mxu0 0.0
  %497 = vmatpush1.msra.mxu0 %v452
  %498 = vmatprep.subr.mxu0 0.0
  %499 = vmatpush1.msra.mxu0 %v453
  %500 = vmatprep.subr.mxu0 0.0
  %501 = vmatpush1.msra.mxu0 %v454
  %502 = vmatprep.subr.mxu0 0.0
  %503 = vmatpush1.msra.mxu0 %v455
  %504 = vmatprep.subr.mxu0 0.0
  %505 = vmatpush1.msra.mxu0 %v456
  %506 = vmatprep.subr.mxu0 0.0
  %507 = vmatpush1.msra.mxu0 %v457
  %508 = vmatprep.subr.mxu0 0.0
  %509 = vmatpush1.msra.mxu0 %v458
  %510 = vmatprep.subr.mxu0 0.0
  %511 = vmatpush1.msra.mxu0 %v459
  %512 = vmatprep.subr.mxu0 0.0
  %513 = vmatpush1.msra.mxu0 %v460
  %514 = vmatprep.subr.mxu0 0.0
  %515 = vmatpush1.msra.mxu0 %v461
  %516 = vmatprep.subr.mxu0 0.0
  %517 = vmatpush1.msra.mxu0 %v462
  %518 = vmatprep.subr.mxu0 0.0
  %519 = vmatpush1.msra.mxu0 %v463
  %520 = vmatprep.subr.mxu0 0.0
  %521 = vmatpush1.msra.mxu0 %v464
  %522 = vmatprep.subr.mxu0 0.0
  %523 = vmatpush1.msra.mxu0 %v465
  %524 = vmatprep.subr.mxu0 0.0
  %525 = vmatpush1.msra.mxu0 %v466
  %526 = vmatprep.subr.mxu0 0.0
  %527 = vmatpush1.msra.mxu0 %v467
  %528 = vmatprep.subr.mxu0 0.0
  %529 = vmatpush1.msra.mxu0 %v468
  %530 = vmatprep.subr.mxu0 0.0
  %531 = vmatpush1.msra.mxu0 %v469
  %532 = vmatprep.subr.mxu0 0.0
  %533 = vmatpush1.msra.mxu0 %v470
  %534 = vmatprep.subr.mxu0 0.0
  %535 = vmatpush1.msra.mxu0 0.0
  %536 = vmatprep.subr.mxu0 0.0
  %537 = vmatpush1.msra.mxu0 0.0
  %538 = vmatprep.subr.mxu0 0.0
  %539 = vmatpush1.msra.mxu0 0.0
  %540 = vmatprep.subr.mxu0 0.0
  %541 = vmatpush1.msra.mxu0 0.0
  %542 = vmatprep.subr.mxu0 0.0
  %543 = vmatpush1.msra.mxu0 0.0
  %544 = vmatprep.subr.mxu0 0.0
  %545 = vmatpush1.msra.mxu0 0.0
  %546 = vmatprep.subr.mxu0 0.0
  %547 = vmatpush1.msra.mxu0 0.0
  %548 = vmatprep.subr.mxu0 0.0
  %549 = vmatpush1.msra.mxu0 0.0
  %550 = vmatprep.mubr.f32.mxu0 %v478
  %551 = vmatmul.mubr.f32.gmra.mrb[0].mxu0 %v443
  %v552 = vpop.f32.mrb[0].mxu0
  %v553 = vadd.f32 %v476, %v552
  %v554 = vpop.f32.mrb[0].mxu0
  %555 = vmatprep.mubr.f32.mxu0 %v480
  %556 = vmatmul.mubr.f32.gmra.mrb[0].mxu0 %v444
  %v557 = vpop.f32.mrb[0].mxu0
  %v558 = vadd.f32 %v476, %v557
  %v559 = vpop.f32.mrb[0].mxu0
  %560 = vmatprep.mubr.f32.mxu0 %v482
  %561 = vmatmul.mubr.f32.gmra.mrb[0].mxu0 %v445
  %v562 = vpop.f32.mrb[0].mxu0
  %v563 = vadd.f32 %v476, %v562
  %v564 = vpop.f32.mrb[0].mxu0
  %565 = vmatprep.mubr.f32.mxu0 %v484
  %566 = vmatmul.mubr.f32.gmra.mrb[0].mxu0 %v446
  %v567 = vpop.f32.mrb[0].mxu0
  %v568 = vadd.f32 %v476, %v567
  %v569 = vpop.f32.mrb[0].mxu0
  %570 = vdwg.mxu0
  %v571 = vxor.u32 %v553, 2147483648
  %v572 = vxor.u32 %v558, 2147483648
  %v573 = vxor.u32 %v563, 2147483648
  %v574 = vxor.u32 %v568, 2147483648
  %v575 = vmul.f32 %v571, 1.442695
  %v576 = vpow.pop %v575
  %v577 = vmul.f32 %v572, 1.442695
  %v578 = vpow.pop %v577
  %v579 = vmul.f32 %v573, 1.442695
  %v580 = vpow.pop %v579
  %v581 = vmul.f32 %v574, 1.442695
  %v582 = vpow.pop %v581
  %v583 = vadd.f32 %v576, 1.0
  %v584 = vadd.f32 %v578, 1.0
  %v585 = vadd.f32 %v580, 1.0
  %v586 = vadd.f32 %v582, 1.0
  %v587 = vrcp.pop %v583
  %v588 = vmul.f32 1.0, %v587
  %v589 = vrcp.pop %v584
  %v590 = vmul.f32 1.0, %v589
  %v591 = vrcp.pop %v585
  %v592 = vmul.f32 1.0, %v591
  %v593 = vrcp.pop %v586
  %v594 = vmul.f32 1.0, %v593
  %599 = vrot.lane.b32.xlu0 %v588, 64
  %v600 = vpop.permute.xlu0 %599
  %601 = vrot.lane.b32.xlu0 %v590, 64
  %v602 = vpop.permute.xlu0 %601
  %603 = vrot.lane.b32.xlu0 %v592, 64
  %v604 = vpop.permute.xlu0 %603
  %605 = vrot.lane.b32.xlu0 %v594, 64
  %v606 = vpop.permute.xlu0 %605
  %v611 = vmul.f32 %v553, %v600
  %v612 = vmul.f32 %v558, %v602
  %v613 = vmul.f32 %v563, %v604
  %v614 = vmul.f32 %v568, %v606
  %v615 = vadd.f32 %v611, %v383
  %v616 = vadd.f32 %v612, %v384
  %v617 = vadd.f32 %v613, %v385
  %v618 = vadd.f32 %v614, %v386
  %v619 = vmul.f32 %v615, 0.70710677
  %v620 = vmul.f32 %v616, 0.70710677
  %v621 = vmul.f32 %v617, 0.70710677
  %v622 = vmul.f32 %v618, 0.70710677
  %v623 = vld [vmem:[%s7] sm:$0xff]
  %v624 = vld [vmem:[%s7 + $0x8] sm:$0xff]
  %v625 = vld [vmem:[%s7 + $0x10] sm:$0xff]
  %v626 = vld [vmem:[%s7 + $0x18] sm:$0xff]
  %v627 = vld [vmem:[%s7 + $0x20] sm:$0xff]
  %v628 = vld [vmem:[%s7 + $0x28] sm:$0xff]
  %v629 = vld [vmem:[%s7 + $0x30] sm:$0xff]
  %v630 = vld [vmem:[%s7 + $0x38] sm:$0xff]
  %v631 = vld [vmem:[%s8] sm:$0x1]
  %v633 = vlaneseq
  %v634 = vshrl.u32 %v633, 7
  %v635 = vsub.s32 0, %v634
  %v636 = vrot.slane %v631, %v635
  %v639 = vsel %vm206, %v619, 0
  %v642 = vsel %vm206, %v620, 0
  %v645 = vsel %vm206, %v621, 0
  %v648 = vsel %vm206, %v622, 0
  %650 = vmatprep.subr.mxu0 0.0
  %651 = vmatpush1.msra.mxu0 %v623
  %652 = vmatprep.subr.mxu0 0.0
  %653 = vmatpush1.msra.mxu0 %v624
  %654 = vmatprep.subr.mxu0 0.0
  %655 = vmatpush1.msra.mxu0 %v625
  %656 = vmatprep.subr.mxu0 0.0
  %657 = vmatpush1.msra.mxu0 %v626
  %658 = vmatprep.subr.mxu0 0.0
  %659 = vmatpush1.msra.mxu0 %v627
  %660 = vmatprep.subr.mxu0 0.0
  %661 = vmatpush1.msra.mxu0 %v628
  %662 = vmatprep.subr.mxu0 0.0
  %663 = vmatpush1.msra.mxu0 %v629
  %664 = vmatprep.subr.mxu0 0.0
  %665 = vmatpush1.msra.mxu0 %v630
  %666 = vmatprep.subr.mxu0 0.0
  %667 = vmatpush1.msra.mxu0 0.0
  %668 = vmatprep.subr.mxu0 0.0
  %669 = vmatpush1.msra.mxu0 0.0
  %670 = vmatprep.subr.mxu0 0.0
  %671 = vmatpush1.msra.mxu0 0.0
  %672 = vmatprep.subr.mxu0 0.0
  %673 = vmatpush1.msra.mxu0 0.0
  %674 = vmatprep.subr.mxu0 0.0
  %675 = vmatpush1.msra.mxu0 0.0
  %676 = vmatprep.subr.mxu0 0.0
  %677 = vmatpush1.msra.mxu0 0.0
  %678 = vmatprep.subr.mxu0 0.0
  %679 = vmatpush1.msra.mxu0 0.0
  %680 = vmatprep.subr.mxu0 0.0
  %681 = vmatpush1.msra.mxu0 0.0
  %682 = vmatprep.subr.mxu0 0.0
  %683 = vmatpush1.msra.mxu0 0.0
  %684 = vmatprep.subr.mxu0 0.0
  %685 = vmatpush1.msra.mxu0 0.0
  %686 = vmatprep.subr.mxu0 0.0
  %687 = vmatpush1.msra.mxu0 0.0
  %688 = vmatprep.subr.mxu0 0.0
  %689 = vmatpush1.msra.mxu0 0.0
  %690 = vmatprep.subr.mxu0 0.0
  %691 = vmatpush1.msra.mxu0 0.0
  %692 = vmatprep.subr.mxu0 0.0
  %693 = vmatpush1.msra.mxu0 0.0
  %694 = vmatprep.subr.mxu0 0.0
  %695 = vmatpush1.msra.mxu0 0.0
  %696 = vmatprep.subr.mxu0 0.0
  %697 = vmatpush1.msra.mxu0 0.0
  %698 = vmatprep.subr.mxu0 0.0
  %699 = vmatpush1.msra.mxu0 0.0
  %700 = vmatprep.subr.mxu0 0.0
  %701 = vmatpush1.msra.mxu0 0.0
  %702 = vmatprep.subr.mxu0 0.0
  %703 = vmatpush1.msra.mxu0 0.0
  %704 = vmatprep.subr.mxu0 0.0
  %705 = vmatpush1.msra.mxu0 0.0
  %706 = vmatprep.subr.mxu0 0.0
  %707 = vmatpush1.msra.mxu0 0.0
  %708 = vmatprep.subr.mxu0 0.0
  %709 = vmatpush1.msra.mxu0 0.0
  %710 = vmatprep.subr.mxu0 0.0
  %711 = vmatpush1.msra.mxu0 0.0
  %712 = vmatprep.subr.mxu0 0.0
  %713 = vmatpush1.msra.mxu0 0.0
  %714 = vmatprep.mubr.f32.mxu0 0.0
  %715 = vmatmul.mubr.f32.gmra.mrb[0].mxu0 %v639
  %v716 = vpop.f32.mrb[0].mxu0
  %v717 = vadd.f32 %v636, %v716
  %v718 = vpop.f32.mrb[0].mxu0
  %719 = vmatprep.mubr.f32.mxu0 0.0
  %720 = vmatmul.mubr.f32.gmra.mrb[0].mxu0 %v642
  %v721 = vpop.f32.mrb[0].mxu0
  %v722 = vadd.f32 %v636, %v721
  %v723 = vpop.f32.mrb[0].mxu0
  %724 = vmatprep.mubr.f32.mxu0 0.0
  %725 = vmatmul.mubr.f32.gmra.mrb[0].mxu0 %v645
  %v726 = vpop.f32.mrb[0].mxu0
  %v727 = vadd.f32 %v636, %v726
  %v728 = vpop.f32.mrb[0].mxu0
  %729 = vmatprep.mubr.f32.mxu0 0.0
  %730 = vmatmul.mubr.f32.gmra.mrb[0].mxu0 %v648
  %v731 = vpop.f32.mrb[0].mxu0
  %v732 = vadd.f32 %v636, %v731
  %v733 = vpop.f32.mrb[0].mxu0
  %734 = vdwg.mxu0
  %735 = vst.msk [vmem:[%s9] sm:$0xff] %vm49, %v717
  %736 = vst.msk [vmem:[%s9 + $0x8] sm:$0xff] %vm49, %v722
  %737 = vst.msk [vmem:[%s9 + $0x10] sm:$0xff] %vm49, %v727
  %738 = vst.msk [vmem:[%s9 + $0x18] sm:$0xff] %vm49, %v732
  %v739 = vadd.f32 %v717, %v34
  %v740 = vadd.f32 %v722, %v35
  %v741 = vadd.f32 %v727, %v36
  %v742 = vadd.f32 %v732, %v37
  %v743 = vmul.f32 %v739, 0.70710677
  %v744 = vmul.f32 %v740, 0.70710677
  %v745 = vmul.f32 %v741, 0.70710677
  %v746 = vmul.f32 %v742, 0.70710677
  %747 = vst.msk [vmem:[%s10] sm:$0xff] %vm49, %v743
  %748 = vst.msk [vmem:[%s10 + $0x8] sm:$0xff] %vm49, %v744
  %749 = vst.msk [vmem:[%s10 + $0x10] sm:$0xff] %vm49, %v745
  %750 = vst.msk [vmem:[%s10 + $0x18] sm:$0xff] %vm49, %v746
  // Predicated region
  $region38: #{convs2s_forward.2} parent=0 // pred_check
    _
  $region39: #{convs2s_forward.2} parent=0 // pred_check_branch
    %752 = sbr.rel (0) target = $region41
  $region40: #{convs2s_forward.2} parent=0 // pred_region
    _
  $region41: #{convs2s_forward.2} parent=0 // pred_fallthru
    _
  // Predicated region
  $region42: #{convs2s_forward.2} parent=0 // pred_check
    _
  $region43: #{convs2s_forward.2} parent=0 // pred_check_branch
    %754 = sbr.rel (0) target = $region45
  $region44: #{convs2s_forward.2} parent=0 // pred_region
    _
  $region45: #{convs2s_forward.2} parent=0 // pred_fallthru
    _
  // Predicated region
  $region46: #{convs2s_forward.2} parent=0 // pred_check
    _
  $region47: #{convs2s_forward.2} parent=0 // pred_check_branch
    %756 = sbr.rel (0) target = $region49
  $region48: #{convs2s_forward.2} parent=0 // pred_region
    _
  $region49: #{convs2s_forward.2} parent=0 // pred_fallthru
    _
  // Predicated region
  $region50: #{convs2s_forward.2} parent=0 // pred_check
    _
  $region51: #{convs2s_forward.2} parent=0 // pred_check_branch
    %758 = sbr.rel (0) target = $region53
  $region52: #{convs2s_forward.2} parent=0 // pred_region
    _
  $region53: #{convs2s_forward.2} parent=0 // pred_fallthru
    _

// kernel: convs2s_forward.3
$region0: #{convs2s_forward.3}
  #allocation0 [shape = 'u32[]', space=smem, size = 0x4, offset = 0x4, fixed_abs, tag = 'smem constant byte address 0x4 - core index']
  #allocation1 [shape = 'u32[144,128]{1,0:T(1,128)}', space=vmem, size = 0x12000, scoped, tag = 'internal scratch']
  %s0 = inlined_call_operand.vmem [shape: f32[2,8,32], index: 0, kind: input, shape index: {}]
  %s1 = inlined_call_operand.vmem [shape: f32[2,16,32], index: 1, kind: input, shape index: {}]
  %s2 = inlined_call_operand.vmem [shape: f32[2,16,32], index: 2, kind: input, shape index: {}]
  %s3 = inlined_call_operand.vmem [shape: f32[32,64], index: 3, kind: input, shape index: {}]
  %s4 = inlined_call_operand.vmem [shape: f32[1,64], index: 4, kind: input, shape index: {}]
  %s5 = inlined_call_operand.vmem [shape: f32[192,128], index: 5, kind: input, shape index: {}]
  %s6 = inlined_call_operand.vmem [shape: f32[1,128], index: 6, kind: input, shape index: {}]
  %s7 = inlined_call_operand.vmem [shape: f32[64,32], index: 7, kind: input, shape index: {}]
  %s8 = inlined_call_operand.vmem [shape: f32[1,32], index: 8, kind: input, shape index: {}]
  %s9 = inlined_call_operand.vmem [shape: f32[32,64], index: 9, kind: input, shape index: {}]
  %s10 = inlined_call_operand.vmem [shape: f32[1,64], index: 10, kind: input, shape index: {}]
  %s11 = inlined_call_operand.vmem [shape: f32[192,128], index: 11, kind: input, shape index: {}]
  %s12 = inlined_call_operand.vmem [shape: f32[1,128], index: 12, kind: input, shape index: {}]
  %s13 = inlined_call_operand.vmem [shape: f32[64,32], index: 13, kind: input, shape index: {}]
  %s14 = inlined_call_operand.vmem [shape: f32[1,32], index: 14, kind: input, shape index: {}]
  %s15 = inlined_call_operand.vmem [shape: f32[32,64], index: 15, kind: input, shape index: {}]
  %s16 = inlined_call_operand.vmem [shape: f32[1,64], index: 16, kind: input, shape index: {}]
  %s17 = inlined_call_operand.vmem [shape: f32[64,32], index: 17, kind: input, shape index: {}]
  %s18 = inlined_call_operand.vmem [shape: f32[1,32], index: 18, kind: input, shape index: {}]
  %s19 = inlined_call_operand.vmem [shape: f32[32,128], index: 19, kind: input, shape index: {}]
  %s20 = inlined_call_operand.vmem [shape: f32[1,128], index: 20, kind: input, shape index: {}]
  %s21 = inlined_call_operand.vmem [shape: f32[2,8,128], index: 21, kind: output, shape index: {}]
  %s22 = sld [smem:[#allocation0]]
  $region94: #{convs2s_forward.3} parent=0
    _
  %s24 = ssub.s32 1, %s22
  %s25 = scalar_select 0, %s24, %s22
  // Predicated region
  $region2: #{convs2s_forward.3} parent=0 // pred_check
    _
  $region3: #{convs2s_forward.3} parent=0 // pred_check_branch
    %27 = sbr.rel (0) target = $region5
  $region4: #{convs2s_forward.3} parent=0 // pred_region
    _
  $region5: #{convs2s_forward.3} parent=0 // pred_fallthru
    _
  // Predicated region
  $region6: #{convs2s_forward.3} parent=0 // pred_check
    _
  $region7: #{convs2s_forward.3} parent=0 // pred_check_branch
    %29 = sbr.rel (0) target = $region9
  $region8: #{convs2s_forward.3} parent=0 // pred_region
    _
  $region9: #{convs2s_forward.3} parent=0 // pred_fallthru
    _
  // Predicated region
  $region10: #{convs2s_forward.3} parent=0 // pred_check
    _
  $region11: #{convs2s_forward.3} parent=0 // pred_check_branch
    %31 = sbr.rel (0) target = $region13
  $region12: #{convs2s_forward.3} parent=0 // pred_region
    _
  $region13: #{convs2s_forward.3} parent=0 // pred_fallthru
    _
  // Predicated region
  $region14: #{convs2s_forward.3} parent=0 // pred_check
    _
  $region15: #{convs2s_forward.3} parent=0 // pred_check_branch
    %33 = sbr.rel (0) target = $region17
  $region16: #{convs2s_forward.3} parent=0 // pred_region
    _
  $region17: #{convs2s_forward.3} parent=0 // pred_fallthru
    _
  // Predicated region
  $region18: #{convs2s_forward.3} parent=0 // pred_check
    _
  $region19: #{convs2s_forward.3} parent=0 // pred_check_branch
    %35 = sbr.rel (0) target = $region21
  $region20: #{convs2s_forward.3} parent=0 // pred_region
    _
  $region21: #{convs2s_forward.3} parent=0 // pred_fallthru
    _
  // Predicated region
  $region22: #{convs2s_forward.3} parent=0 // pred_check
    _
  $region23: #{convs2s_forward.3} parent=0 // pred_check_branch
    %37 = sbr.rel (0) target = $region25
  $region24: #{convs2s_forward.3} parent=0 // pred_region
    _
  $region25: #{convs2s_forward.3} parent=0 // pred_fallthru
    _
  // Predicated region
  $region26: #{convs2s_forward.3} parent=0 // pred_check
    _
  $region27: #{convs2s_forward.3} parent=0 // pred_check_branch
    %39 = sbr.rel (0) target = $region29
  $region28: #{convs2s_forward.3} parent=0 // pred_region
    _
  $region29: #{convs2s_forward.3} parent=0 // pred_fallthru
    _
  // Predicated region
  $region30: #{convs2s_forward.3} parent=0 // pred_check
    _
  $region31: #{convs2s_forward.3} parent=0 // pred_check_branch
    %41 = sbr.rel (0) target = $region33
  $region32: #{convs2s_forward.3} parent=0 // pred_region
    _
  $region33: #{convs2s_forward.3} parent=0 // pred_fallthru
    _
  // Predicated region
  $region34: #{convs2s_forward.3} parent=0 // pred_check
    _
  $region35: #{convs2s_forward.3} parent=0 // pred_check_branch
    %43 = sbr.rel (0) target = $region37
  $region36: #{convs2s_forward.3} parent=0 // pred_region
    _
  $region37: #{convs2s_forward.3} parent=0 // pred_fallthru
    _
  // Predicated region
  $region38: #{convs2s_forward.3} parent=0 // pred_check
    _
  $region39: #{convs2s_forward.3} parent=0 // pred_check_branch
    %45 = sbr.rel (0) target = $region41
  $region40: #{convs2s_forward.3} parent=0 // pred_region
    _
  $region41: #{convs2s_forward.3} parent=0 // pred_fallthru
    _
  // Predicated region
  $region42: #{convs2s_forward.3} parent=0 // pred_check
    _
  $region43: #{convs2s_forward.3} parent=0 // pred_check_branch
    %47 = sbr.rel (0) target = $region45
  $region44: #{convs2s_forward.3} parent=0 // pred_region
    _
  $region45: #{convs2s_forward.3} parent=0 // pred_fallthru
    _
  // Predicated region
  $region46: #{convs2s_forward.3} parent=0 // pred_check
    _
  $region47: #{convs2s_forward.3} parent=0 // pred_check_branch
    %49 = sbr.rel (0) target = $region49
  $region48: #{convs2s_forward.3} parent=0 // pred_region
    _
  $region49: #{convs2s_forward.3} parent=0 // pred_fallthru
    _
  // Predicated region
  $region50: #{convs2s_forward.3} parent=0 // pred_check
    _
  $region51: #{convs2s_forward.3} parent=0 // pred_check_branch
    %51 = sbr.rel (0) target = $region53
  $region52: #{convs2s_forward.3} parent=0 // pred_region
    _
  $region53: #{convs2s_forward.3} parent=0 // pred_fallthru
    _
  // Predicated region
  $region54: #{convs2s_forward.3} parent=0 // pred_check
    _
  $region55: #{convs2s_forward.3} parent=0 // pred_check_branch
    %53 = sbr.rel (0) target = $region57
  $region56: #{convs2s_forward.3} parent=0 // pred_region
    _
  $region57: #{convs2s_forward.3} parent=0 // pred_fallthru
    _
  // Predicated region
  $region58: #{convs2s_forward.3} parent=0 // pred_check
    _
  $region59: #{convs2s_forward.3} parent=0 // pred_check_branch
    %55 = sbr.rel (0) target = $region61
  $region60: #{convs2s_forward.3} parent=0 // pred_region
    _
  $region61: #{convs2s_forward.3} parent=0 // pred_fallthru
    _
  // Predicated region
  $region62: #{convs2s_forward.3} parent=0 // pred_check
    _
  $region63: #{convs2s_forward.3} parent=0 // pred_check_branch
    %57 = sbr.rel (0) target = $region65
  $region64: #{convs2s_forward.3} parent=0 // pred_region
    _
  $region65: #{convs2s_forward.3} parent=0 // pred_fallthru
    _
  // Predicated region
  $region66: #{convs2s_forward.3} parent=0 // pred_check
    _
  $region67: #{convs2s_forward.3} parent=0 // pred_check_branch
    %59 = sbr.rel (0) target = $region69
  $region68: #{convs2s_forward.3} parent=0 // pred_region
    _
  $region69: #{convs2s_forward.3} parent=0 // pred_fallthru
    _
  // Predicated region
  $region70: #{convs2s_forward.3} parent=0 // pred_check
    _
  $region71: #{convs2s_forward.3} parent=0 // pred_check_branch
    %61 = sbr.rel (0) target = $region73
  $region72: #{convs2s_forward.3} parent=0 // pred_region
    _
  $region73: #{convs2s_forward.3} parent=0 // pred_fallthru
    _
  // Predicated region
  $region74: #{convs2s_forward.3} parent=0 // pred_check
    _
  $region75: #{convs2s_forward.3} parent=0 // pred_check_branch
    %63 = sbr.rel (0) target = $region77
  $region76: #{convs2s_forward.3} parent=0 // pred_region
    _
  $region77: #{convs2s_forward.3} parent=0 // pred_fallthru
    _
  // Predicated region
  $region78: #{convs2s_forward.3} parent=0 // pred_check
    _
  $region79: #{convs2s_forward.3} parent=0 // pred_check_branch
    %65 = sbr.rel (0) target = $region81
  $region80: #{convs2s_forward.3} parent=0 // pred_region
    _
  $region81: #{convs2s_forward.3} parent=0 // pred_fallthru
    _
  // Predicated region
  $region82: #{convs2s_forward.3} parent=0 // pred_check
    _
  $region83: #{convs2s_forward.3} parent=0 // pred_check_branch
    %67 = sbr.rel (0) target = $region85
  $region84: #{convs2s_forward.3} parent=0 // pred_region
    _
  $region85: #{convs2s_forward.3} parent=0 // pred_fallthru
    _
  %v68 = vld [vmem:[%s0] sm:$0xff]
  %v69 = vld [vmem:[%s0 + $0x8] sm:$0xff]
  %v70 = vld [vmem:[%s1] sm:$0xff]
  %v71 = vld [vmem:[%s1 + $0x8] sm:$0xff]
  %v72 = vld [vmem:[%s1 + $0x10] sm:$0xff]
  %v73 = vld [vmem:[%s1 + $0x18] sm:$0xff]
  %v74 = vld [vmem:[%s2] sm:$0xff]
  %v75 = vld [vmem:[%s2 + $0x8] sm:$0xff]
  %v76 = vld [vmem:[%s2 + $0x10] sm:$0xff]
  %v77 = vld [vmem:[%s2 + $0x18] sm:$0xff]
  %v78 = vld [vmem:[%s3] sm:$0xff]
  %v79 = vld [vmem:[%s3 + $0x8] sm:$0xff]
  %v80 = vld [vmem:[%s3 + $0x10] sm:$0xff]
  %v81 = vld [vmem:[%s3 + $0x18] sm:$0xff]
  %v82 = vld [vmem:[%s4] sm:$0x1]
  %v84 = vlaneseq
  %v85 = vshrl.u32 %v84, 7
  %v86 = vsub.s32 0, %v85
  %v87 = vrot.slane %v82, %v86
  %vm89 = vcmask 261120
  %v91 = vsel %vm89, %v68, 0
  %v94 = vsel %vm89, %v69, 0
  %96 = vmatprep.subr.mxu0 0.0
  %97 = vmatpush1.msra.mxu0 %v78
  %98 = vmatprep.subr.mxu0 0.0
  %99 = vmatpush1.msra.mxu0 %v79
  %100 = vmatprep.subr.mxu0 0.0
  %101 = vmatpush1.msra.mxu0 %v80
  %102 = vmatprep.subr.mxu0 0.0
  %103 = vmatpush1.msra.mxu0 %v81
  %104 = vmatprep.subr.mxu0 0.0
  %105 = vmatpush1.msra.mxu0 0.0
  %106 = vmatprep.subr.mxu0 0.0
  %107 = vmatpush1.msra.mxu0 0.0
  %108 = vmatprep.subr.mxu0 0.0
  %109 = vmatpush1.msra.mxu0 0.0
  %110 = vmatprep.subr.mxu0 0.0
  %111 = vmatpush1.msra.mxu0 0.0
  %112 = vmatprep.subr.mxu0 0.0
  %113 = vmatpush1.msra.mxu0 0.0
  %114 = vmatprep.subr.mxu0 0.0
  %115 = vmatpush1.msra.mxu0 0.0
  %116 = vmatprep.subr.mxu0 0.0
  %117 = vmatpush1.msra.mxu0 0.0
  %118 = vmatprep.subr.mxu0 0.0
  %119 = vmatpush1.msra.mxu0 0.0
  %120 = vmatprep.subr.mxu0 0.0
  %121 = vmatpush1.msra.mxu0 0.0
  %122 = vmatprep.subr.mxu0 0.0
  %123 = vmatpush1.msra.mxu0 0.0
  %124 = vmatprep.subr.mxu0 0.0
  %125 = vmatpush1.msra.mxu0 0.0
  %126 = vmatprep.subr.mxu0 0.0
  %127 = vmatpush1.msra.mxu0 0.0
  %128 = vmatprep.subr.mxu0 0.0
  %129 = vmatpush1.msra.mxu0 0.0
  %130 = vmatprep.subr.mxu0 0.0
  %131 = vmatpush1.msra.mxu0 0.0
  %132 = vmatprep.subr.mxu0 0.0
  %133 = vmatpush1.msra.mxu0 0.0
  %134 = vmatprep.subr.mxu0 0.0
  %135 = vmatpush1.msra.mxu0 0.0
  %136 = vmatprep.subr.mxu0 0.0
  %137 = vmatpush1.msra.mxu0 0.0
  %138 = vmatprep.subr.mxu0 0.0
  %139 = vmatpush1.msra.mxu0 0.0
  %140 = vmatprep.subr.mxu0 0.0
  %141 = vmatpush1.msra.mxu0 0.0
  %142 = vmatprep.subr.mxu0 0.0
  %143 = vmatpush1.msra.mxu0 0.0
  %144 = vmatprep.subr.mxu0 0.0
  %145 = vmatpush1.msra.mxu0 0.0
  %146 = vmatprep.subr.mxu0 0.0
  %147 = vmatpush1.msra.mxu0 0.0
  %148 = vmatprep.subr.mxu0 0.0
  %149 = vmatpush1.msra.mxu0 0.0
  %150 = vmatprep.subr.mxu0 0.0
  %151 = vmatpush1.msra.mxu0 0.0
  %152 = vmatprep.subr.mxu0 0.0
  %153 = vmatpush1.msra.mxu0 0.0
  %154 = vmatprep.subr.mxu0 0.0
  %155 = vmatpush1.msra.mxu0 0.0
  %156 = vmatprep.subr.mxu0 0.0
  %157 = vmatpush1.msra.mxu0 0.0
  %158 = vmatprep.subr.mxu0 0.0
  %159 = vmatpush1.msra.mxu0 0.0
  %160 = vmatprep.mubr.f32.mxu0 0.0
  %161 = vmatmul.mubr.f32.gmra.mrb[0].mxu0 %v91
  %v162 = vpop.f32.mrb[0].mxu0
  %v163 = vadd.f32 %v87, %v162
  %v164 = vpop.f32.mrb[0].mxu0
  %165 = vmatprep.mubr.f32.mxu0 0.0
  %166 = vmatmul.mubr.f32.gmra.mrb[0].mxu0 %v94
  %v167 = vpop.f32.mrb[0].mxu0
  %v168 = vadd.f32 %v87, %v167
  %v169 = vpop.f32.mrb[0].mxu0
  %170 = vdwg.mxu0
  %v173 = vrot.slane %v163, 6
  %v174 = vrot.slane %v168, 6
  %vm177 = vcmask 1041408
  %v178 = vsel %vm177, 0.0, %v173
  %v179 = vsel %vm177, 0.0, %v174
  %vm182 = vcmask 1046528
  %v183 = vrot.slane %v178, 1
  %v184 = vrot.slane %v173, 1
  %v185 = vsel %vm182, %v183, %v184
  %v186 = vrot.slane %v179, 1
  %v187 = vrot.slane %v174, 1
  %v188 = vsel %vm182, %v186, %v187
  %189 = vrot.lane.b32.xlu0 %v185, 64
  %v190 = vpop.permute.xlu0 %189
  %191 = vrot.lane.b32.xlu0 %v188, 64
  %v192 = vpop.permute.xlu0 %191
  %vm195 = vcmask 1045504
  %v196 = vrot.slane %v178, 2
  %v197 = vrot.slane %v173, 2
  %v198 = vsel %vm195, %v196, %v197
  %v199 = vrot.slane %v179, 2
  %v200 = vrot.slane %v174, 2
  %v201 = vsel %vm195, %v199, %v200
  %vm202 = vcmask 523264
  %v203 = vsel %vm202, %v178, %v190
  %v204 = vsel %vm202, %v179, %v192
  %v205 = vld [vmem:[%s5] sm:$0xff]
  %v206 = vld [vmem:[%s5 + $0x8] sm:$0xff]
  %v207 = vld [vmem:[%s5 + $0x10] sm:$0xff]
  %v208 = vld [vmem:[%s5 + $0x18] sm:$0xff]
  %v209 = vld [vmem:[%s5 + $0x20] sm:$0xff]
  %v210 = vld [vmem:[%s5 + $0x28] sm:$0xff]
  %v211 = vld [vmem:[%s5 + $0x30] sm:$0xff]
  %v212 = vld [vmem:[%s5 + $0x38] sm:$0xff]
  %v213 = vld [vmem:[%s5 + $0x40] sm:$0xff]
  %v214 = vld [vmem:[%s5 + $0x48] sm:$0xff]
  %v215 = vld [vmem:[%s5 + $0x50] sm:$0xff]
  %v216 = vld [vmem:[%s5 + $0x58] sm:$0xff]
  %v217 = vld [vmem:[%s5 + $0x60] sm:$0xff]
  %v218 = vld [vmem:[%s5 + $0x68] sm:$0xff]
  %v219 = vld [vmem:[%s5 + $0x70] sm:$0xff]
  %v220 = vld [vmem:[%s5 + $0x78] sm:$0xff]
  %v221 = vld [vmem:[%s5 + $0x80] sm:$0xff]
  %v222 = vld [vmem:[%s5 + $0x88] sm:$0xff]
  %v223 = vld [vmem:[%s5 + $0x90] sm:$0xff]
  %v224 = vld [vmem:[%s5 + $0x98] sm:$0xff]
  %v225 = vld [vmem:[%s5 + $0xa0] sm:$0xff]
  %v226 = vld [vmem:[%s5 + $0xa8] sm:$0xff]
  %v227 = vld [vmem:[%s5 + $0xb0] sm:$0xff]
  %v228 = vld [vmem:[%s5 + $0xb8] sm:$0xff]
  %v229 = vld [vmem:[%s6] sm:$0x1]
  %v231 = vlaneseq
  %v232 = vshrl.u32 %v231, 7
  %v233 = vsub.s32 0, %v232
  %v234 = vrot.slane %v229, %v233
  %v236 = vsel %vm202, %v198, 0
  %v238 = vsel %vm202, %v201, 0
  %240 = vmatprep.subr.mxu0 0.0
  %241 = vmatpush1.msra.mxu0 %v205
  %242 = vmatprep.subr.mxu0 0.0
  %243 = vmatpush1.msra.mxu0 %v206
  %244 = vmatprep.subr.mxu0 0.0
  %245 = vmatpush1.msra.mxu0 %v207
  %246 = vmatprep.subr.mxu0 0.0
  %247 = vmatpush1.msra.mxu0 %v208
  %248 = vmatprep.subr.mxu0 0.0
  %249 = vmatpush1.msra.mxu0 %v209
  %250 = vmatprep.subr.mxu0 0.0
  %251 = vmatpush1.msra.mxu0 %v210
  %252 = vmatprep.subr.mxu0 0.0
  %253 = vmatpush1.msra.mxu0 %v211
  %254 = vmatprep.subr.mxu0 0.0
  %255 = vmatpush1.msra.mxu0 %v212
  %256 = vmatprep.subr.mxu0 0.0
  %257 = vmatpush1.msra.mxu0 %v213
  %258 = vmatprep.subr.mxu0 0.0
  %259 = vmatpush1.msra.mxu0 %v214
  %260 = vmatprep.subr.mxu0 0.0
  %261 = vmatpush1.msra.mxu0 %v215
  %262 = vmatprep.subr.mxu0 0.0
  %263 = vmatpush1.msra.mxu0 %v216
  %264 = vmatprep.subr.mxu0 0.0
  %265 = vmatpush1.msra.mxu0 %v217
  %266 = vmatprep.subr.mxu0 0.0
  %267 = vmatpush1.msra.mxu0 %v218
  %268 = vmatprep.subr.mxu0 0.0
  %269 = vmatpush1.msra.mxu0 %v219
  %270 = vmatprep.subr.mxu0 0.0
  %271 = vmatpush1.msra.mxu0 %v220
  %272 = vmatprep.subr.mxu0 0.0
  %273 = vmatpush1.msra.mxu0 %v221
  %274 = vmatprep.subr.mxu0 0.0
  %275 = vmatpush1.msra.mxu0 %v222
  %276 = vmatprep.subr.mxu0 0.0
  %277 = vmatpush1.msra.mxu0 %v223
  %278 = vmatprep.subr.mxu0 0.0
  %279 = vmatpush1.msra.mxu0 %v224
  %280 = vmatprep.subr.mxu0 0.0
  %281 = vmatpush1.msra.mxu0 %v225
  %282 = vmatprep.subr.mxu0 0.0
  %283 = vmatpush1.msra.mxu0 %v226
  %284 = vmatprep.subr.mxu0 0.0
  %285 = vmatpush1.msra.mxu0 %v227
  %286 = vmatprep.subr.mxu0 0.0
  %287 = vmatpush1.msra.mxu0 %v228
  %288 = vmatprep.subr.mxu0 0.0
  %289 = vmatpush1.msra.mxu0 0.0
  %290 = vmatprep.subr.mxu0 0.0
  %291 = vmatpush1.msra.mxu0 0.0
  %292 = vmatprep.subr.mxu0 0.0
  %293 = vmatpush1.msra.mxu0 0.0
  %294 = vmatprep.subr.mxu0 0.0
  %295 = vmatpush1.msra.mxu0 0.0
  %296 = vmatprep.subr.mxu0 0.0
  %297 = vmatpush1.msra.mxu0 0.0
  %298 = vmatprep.subr.mxu0 0.0
  %299 = vmatpush1.msra.mxu0 0.0
  %300 = vmatprep.subr.mxu0 0.0
  %301 = vmatpush1.msra.mxu0 0.0
  %302 = vmatprep.subr.mxu0 0.0
  %303 = vmatpush1.msra.mxu0 0.0
  %304 = vmatprep.mubr.f32.mxu0 %v236
  %305 = vmatmul.mubr.f32.gmra.mrb[0].mxu0 %v203
  %v306 = vpop.f32.mrb[0].mxu0
  %v307 = vadd.f32 %v234, %v306
  %v308 = vpop.f32.mrb[0].mxu0
  %309 = vmatprep.mubr.f32.mxu0 %v238
  %310 = vmatmul.mubr.f32.gmra.mrb[0].mxu0 %v204
  %v311 = vpop.f32.mrb[0].mxu0
  %v312 = vadd.f32 %v234, %v311
  %v313 = vpop.f32.mrb[0].mxu0
  %314 = vdwg.mxu0
  %v315 = vxor.u32 %v307, 2147483648
  %v316 = vxor.u32 %v312, 2147483648
  %v317 = vmul.f32 %v315, 1.442695
  %v318 = vpow.pop %v317
  %v319 = vmul.f32 %v316, 1.442695
  %v320 = vpow.pop %v319
  %v321 = vadd.f32 %v318, 1.0
  %v322 = vadd.f32 %v320, 1.0
  %v323 = vrcp.pop %v321
  %v324 = vmul.f32 1.0, %v323
  %v325 = vrcp.pop %v322
  %v326 = vmul.f32 1.0, %v325
  %329 = vrot.lane.b32.xlu0 %v324, 64
  %v330 = vpop.permute.xlu0 %329
  %331 = vrot.lane.b32.xlu0 %v326, 64
  %v332 = vpop.permute.xlu0 %331
  %v335 = vmul.f32 %v307, %v330
  %v336 = vmul.f32 %v312, %v332
  %v337 = vld [vmem:[%s7] sm:$0xff]
  %v338 = vld [vmem:[%s7 + $0x8] sm:$0xff]
  %v339 = vld [vmem:[%s7 + $0x10] sm:$0xff]
  %v340 = vld [vmem:[%s7 + $0x18] sm:$0xff]
  %v341 = vld [vmem:[%s7 + $0x20] sm:$0xff]
  %v342 = vld [vmem:[%s7 + $0x28] sm:$0xff]
  %v343 = vld [vmem:[%s7 + $0x30] sm:$0xff]
  %v344 = vld [vmem:[%s7 + $0x38] sm:$0xff]
  %v345 = vld [vmem:[%s8] sm:$0x1]
  %v347 = vlaneseq
  %v348 = vshrl.u32 %v347, 7
  %v349 = vsub.s32 0, %v348
  %v350 = vrot.slane %v345, %v349
  %v353 = vsel %vm202, %v335, 0
  %v356 = vsel %vm202, %v336, 0
  %358 = vmatprep.subr.mxu0 0.0
  %359 = vmatpush1.msra.mxu0 %v337
  %360 = vmatprep.subr.mxu0 0.0
  %361 = vmatpush1.msra.mxu0 %v338
  %362 = vmatprep.subr.mxu0 0.0
  %363 = vmatpush1.msra.mxu0 %v339
  %364 = vmatprep.subr.mxu0 0.0
  %365 = vmatpush1.msra.mxu0 %v340
  %366 = vmatprep.subr.mxu0 0.0
  %367 = vmatpush1.msra.mxu0 %v341
  %368 = vmatprep.subr.mxu0 0.0
  %369 = vmatpush1.msra.mxu0 %v342
  %370 = vmatprep.subr.mxu0 0.0
  %371 = vmatpush1.msra.mxu0 %v343
  %372 = vmatprep.subr.mxu0 0.0
  %373 = vmatpush1.msra.mxu0 %v344
  %374 = vmatprep.subr.mxu0 0.0
  %375 = vmatpush1.msra.mxu0 0.0
  %376 = vmatprep.subr.mxu0 0.0
  %377 = vmatpush1.msra.mxu0 0.0
  %378 = vmatprep.subr.mxu0 0.0
  %379 = vmatpush1.msra.mxu0 0.0
  %380 = vmatprep.subr.mxu0 0.0
  %381 = vmatpush1.msra.mxu0 0.0
  %382 = vmatprep.subr.mxu0 0.0
  %383 = vmatpush1.msra.mxu0 0.0
  %384 = vmatprep.subr.mxu0 0.0
  %385 = vmatpush1.msra.mxu0 0.0
  %386 = vmatprep.subr.mxu0 0.0
  %387 = vmatpush1.msra.mxu0 0.0
  %388 = vmatprep.subr.mxu0 0.0
  %389 = vmatpush1.msra.mxu0 0.0
  %390 = vmatprep.subr.mxu0 0.0
  %391 = vmatpush1.msra.mxu0 0.0
  %392 = vmatprep.subr.mxu0 0.0
  %393 = vmatpush1.msra.mxu0 0.0
  %394 = vmatprep.subr.mxu0 0.0
  %395 = vmatpush1.msra.mxu0 0.0
  %396 = vmatprep.subr.mxu0 0.0
  %397 = vmatpush1.msra.mxu0 0.0
  %398 = vmatprep.subr.mxu0 0.0
  %399 = vmatpush1.msra.mxu0 0.0
  %400 = vmatprep.subr.mxu0 0.0
  %401 = vmatpush1.msra.mxu0 0.0
  %402 = vmatprep.subr.mxu0 0.0
  %403 = vmatpush1.msra.mxu0 0.0
  %404 = vmatprep.subr.mxu0 0.0
  %405 = vmatpush1.msra.mxu0 0.0
  %406 = vmatprep.subr.mxu0 0.0
  %407 = vmatpush1.msra.mxu0 0.0
  %408 = vmatprep.subr.mxu0 0.0
  %409 = vmatpush1.msra.mxu0 0.0
  %410 = vmatprep.subr.mxu0 0.0
  %411 = vmatpush1.msra.mxu0 0.0
  %412 = vmatprep.subr.mxu0 0.0
  %413 = vmatpush1.msra.mxu0 0.0
  %414 = vmatprep.subr.mxu0 0.0
  %415 = vmatpush1.msra.mxu0 0.0
  %416 = vmatprep.subr.mxu0 0.0
  %417 = vmatpush1.msra.mxu0 0.0
  %418 = vmatprep.subr.mxu0 0.0
  %419 = vmatpush1.msra.mxu0 0.0
  %420 = vmatprep.subr.mxu0 0.0
  %421 = vmatpush1.msra.mxu0 0.0
  %422 = vmatprep.mubr.f32.mxu0 0.0
  %423 = vmatmul.mubr.f32.gmra.mrb[0].mxu0 %v353
  %v424 = vpop.f32.mrb[0].mxu0
  %v425 = vadd.f32 %v350, %v424
  %v426 = vpop.f32.mrb[0].mxu0
  %427 = vmatprep.mubr.f32.mxu0 0.0
  %428 = vmatmul.mubr.f32.gmra.mrb[0].mxu0 %v356
  %v429 = vpop.f32.mrb[0].mxu0
  %v430 = vadd.f32 %v350, %v429
  %v431 = vpop.f32.mrb[0].mxu0
  %432 = vdwg.mxu0
  %v433 = vadd.f32 %v425, %v68
  %v434 = vadd.f32 %v430, %v69
  %v435 = vmul.f32 %v433, 0.70710677
  %v436 = vmul.f32 %v434, 0.70710677
  %v438 = vsel %vm89, %v435, 0
  %v441 = vsel %vm89, %v70, 0
  %v444 = vsel %vm89, %v71, 0
  %446 = vmatprep.subr.mxu0 0.0
  %447 = vmatpush1.xpose.msra.mxu0 %v441
  %448 = vmatprep.subr.mxu0 0.0
  %449 = vmatpush1.xpose.msra.mxu0 %v444
  %450 = vmatprep.subr.mxu0 0.0
  %451 = vmatpush1.xpose.msra.mxu0 0.0
  %452 = vmatprep.subr.mxu0 0.0
  %453 = vmatpush1.xpose.msra.mxu0 0.0
  %454 = vmatprep.subr.mxu0 0.0
  %455 = vmatpush1.xpose.msra.mxu0 0.0
  %456 = vmatprep.subr.mxu0 0.0
  %457 = vmatpush1.xpose.msra.mxu0 0.0
  %458 = vmatprep.subr.mxu0 0.0
  %459 = vmatpush1.xpose.msra.mxu0 0.0
  %460 = vmatprep.subr.mxu0 0.0
  %461 = vmatpush1.xpose.msra.mxu0 0.0
  %462 = vmatprep.subr.mxu0 0.0
  %463 = vmatpush1.xpose.msra.mxu0 0.0
  %464 = vmatprep.subr.mxu0 0.0
  %465 = vmatpush1.xpose.msra.mxu0 0.0
  %466 = vmatprep.subr.mxu0 0.0
  %467 = vmatpush1.xpose.msra.mxu0 0.0
  %468 = vmatprep.subr.mxu0 0.0
  %469 = vmatpush1.xpose.msra.mxu0 0.0
  %470 = vmatprep.subr.mxu0 0.0
  %471 = vmatpush1.xpose.msra.mxu0 0.0
  %472 = vmatprep.subr.mxu0 0.0
  %473 = vmatpush1.xpose.msra.mxu0 0.0
  %474 = vmatprep.subr.mxu0 0.0
  %475 = vmatpush1.xpose.msra.mxu0 0.0
  %476 = vmatprep.subr.mxu0 0.0
  %477 = vmatpush1.xpose.msra.mxu0 0.0
  %478 = vmatprep.subr.mxu0 0.0
  %479 = vmatpush1.xpose.msra.mxu0 0.0
  %480 = vmatprep.subr.mxu0 0.0
  %481 = vmatpush1.xpose.msra.mxu0 0.0
  %482 = vmatprep.subr.mxu0 0.0
  %483 = vmatpush1.xpose.msra.mxu0 0.0
  %484 = vmatprep.subr.mxu0 0.0
  %485 = vmatpush1.xpose.msra.mxu0 0.0
  %486 = vmatprep.subr.mxu0 0.0
  %487 = vmatpush1.xpose.msra.mxu0 0.0
  %488 = vmatprep.subr.mxu0 0.0
  %489 = vmatpush1.xpose.msra.mxu0 0.0
  %490 = vmatprep.subr.mxu0 0.0
  %491 = vmatpush1.xpose.msra.mxu0 0.0
  %492 = vmatprep.subr.mxu0 0.0
  %493 = vmatpush1.xpose.msra.mxu0 0.0
  %494 = vmatprep.subr.mxu0 0.0
  %495 = vmatpush1.xpose.msra.mxu0 0.0
  %496 = vmatprep.subr.mxu0 0.0
  %497 = vmatpush1.xpose.msra.mxu0 0.0
  %498 = vmatprep.subr.mxu0 0.0
  %499 = vmatpush1.xpose.msra.mxu0 0.0
  %500 = vmatprep.subr.mxu0 0.0
  %501 = vmatpush1.xpose.msra.mxu0 0.0
  %502 = vmatprep.subr.mxu0 0.0
  %503 = vmatpush1.xpose.msra.mxu0 0.0
  %504 = vmatprep.subr.mxu0 0.0
  %505 = vmatpush1.xpose.msra.mxu0 0.0
  %506 = vmatprep.subr.mxu0 0.0
  %507 = vmatpush1.xpose.msra.mxu0 0.0
  %508 = vmatprep.subr.mxu0 0.0
  %509 = vmatpush1.xpose.msra.mxu0 0.0
  %510 = vmatprep.mubr.f32.mxu0 0.0
  %511 = vmatmul.mubr.f32.gmra.mrb[0].mxu0 %v438
  %v512 = vpop.f32.mrb[0].mxu0
  %v513 = vadd.f32 0.0, %v512
  %v514 = vpop.f32.mrb[0].mxu0
  %515 = vdwg.mxu0
  %v517 = vsel %vm89, %v436, 0
  %v520 = vsel %vm89, %v72, 0
  %v523 = vsel %vm89, %v73, 0
  %525 = vmatprep.subr.mxu0 0.0
  %526 = vmatpush1.xpose.msra.mxu0 %v520
  %527 = vmatprep.subr.mxu0 0.0
  %528 = vmatpush1.xpose.msra.mxu0 %v523
  %529 = vmatprep.subr.mxu0 0.0
  %530 = vmatpush1.xpose.msra.mxu0 0.0
  %531 = vmatprep.subr.mxu0 0.0
  %532 = vmatpush1.xpose.msra.mxu0 0.0
  %533 = vmatprep.subr.mxu0 0.0
  %534 = vmatpush1.xpose.msra.mxu0 0.0
  %535 = vmatprep.subr.mxu0 0.0
  %536 = vmatpush1.xpose.msra.mxu0 0.0
  %537 = vmatprep.subr.mxu0 0.0
  %538 = vmatpush1.xpose.msra.mxu0 0.0
  %539 = vmatprep.subr.mxu0 0.0
  %540 = vmatpush1.xpose.msra.mxu0 0.0
  %541 = vmatprep.subr.mxu0 0.0
  %542 = vmatpush1.xpose.msra.mxu0 0.0
  %543 = vmatprep.subr.mxu0 0.0
  %544 = vmatpush1.xpose.msra.mxu0 0.0
  %545 = vmatprep.subr.mxu0 0.0
  %546 = vmatpush1.xpose.msra.mxu0 0.0
  %547 = vmatprep.subr.mxu0 0.0
  %548 = vmatpush1.xpose.msra.mxu0 0.0
  %549 = vmatprep.subr.mxu0 0.0
  %550 = vmatpush1.xpose.msra.mxu0 0.0
  %551 = vmatprep.subr.mxu0 0.0
  %552 = vmatpush1.xpose.msra.mxu0 0.0
  %553 = vmatprep.subr.mxu0 0.0
  %554 = vmatpush1.xpose.msra.mxu0 0.0
  %555 = vmatprep.subr.mxu0 0.0
  %556 = vmatpush1.xpose.msra.mxu0 0.0
  %557 = vmatprep.subr.mxu0 0.0
  %558 = vmatpush1.xpose.msra.mxu0 0.0
  %559 = vmatprep.subr.mxu0 0.0
  %560 = vmatpush1.xpose.msra.mxu0 0.0
  %561 = vmatprep.subr.mxu0 0.0
  %562 = vmatpush1.xpose.msra.mxu0 0.0
  %563 = vmatprep.subr.mxu0 0.0
  %564 = vmatpush1.xpose.msra.mxu0 0.0
  %565 = vmatprep.subr.mxu0 0.0
  %566 = vmatpush1.xpose.msra.mxu0 0.0
  %567 = vmatprep.subr.mxu0 0.0
  %568 = vmatpush1.xpose.msra.mxu0 0.0
  %569 = vmatprep.subr.mxu0 0.0
  %570 = vmatpush1.xpose.msra.mxu0 0.0
  %571 = vmatprep.subr.mxu0 0.0
  %572 = vmatpush1.xpose.msra.mxu0 0.0
  %573 = vmatprep.subr.mxu0 0.0
  %574 = vmatpush1.xpose.msra.mxu0 0.0
  %575 = vmatprep.subr.mxu0 0.0
  %576 = vmatpush1.xpose.msra.mxu0 0.0
  %577 = vmatprep.subr.mxu0 0.0
  %578 = vmatpush1.xpose.msra.mxu0 0.0
  %579 = vmatprep.subr.mxu0 0.0
  %580 = vmatpush1.xpose.msra.mxu0 0.0
  %581 = vmatprep.subr.mxu0 0.0
  %582 = vmatpush1.xpose.msra.mxu0 0.0
  %583 = vmatprep.subr.mxu0 0.0
  %584 = vmatpush1.xpose.msra.mxu0 0.0
  %585 = vmatprep.subr.mxu0 0.0
  %586 = vmatpush1.xpose.msra.mxu0 0.0
  %587 = vmatprep.subr.mxu0 0.0
  %588 = vmatpush1.xpose.msra.mxu0 0.0
  %589 = vmatprep.mubr.f32.mxu0 0.0
  %590 = vmatmul.mubr.f32.gmra.mrb[0].mxu0 %v517
  %v591 = vpop.f32.mrb[0].mxu0
  %v592 = vadd.f32 0.0, %v591
  %v593 = vpop.f32.mrb[0].mxu0
  %594 = vdwg.mxu0
  %vm595 = vcmask 130048
  %v596 = vsel %vm595, %v513, -inf
  %597 = vmax.xlane.f32.xlu0 %v596
  %v598 = vpop.xlane.xlu0 %597
  %v599 = vsel %vm595, %v592, -inf
  %600 = vmax.xlane.f32.xlu0 %v599
  %v601 = vpop.xlane.xlu0 %600
  %v602 = vsub.f32 %v513, %v598
  %v603 = vsub.f32 %v592, %v601
  %v604 = vmul.f32 %v602, 1.442695
  %v605 = vpow.pop %v604
  %v606 = vmul.f32 %v603, 1.442695
  %v607 = vpow.pop %v606
  %v608 = vsel %vm595, %v605, 0.0
  %609 = vadd.xlane.f32.xlu0 %v608
  %v610 = vpop.xlane.xlu0 %609
  %v611 = vsel %vm595, %v607, 0.0
  %612 = vadd.xlane.f32.xlu0 %v611
  %v613 = vpop.xlane.xlu0 %612
  %v614 = vrcp.pop %v610
  %v615 = vmul.f32 %v605, %v614
  %v616 = vrcp.pop %v613
  %v617 = vmul.f32 %v607, %v616
  %v619 = vsel %vm595, %v615, 0
  %621 = vmatprep.subr.mxu0 0.0
  %622 = vmatpush1.msra.mxu0 %v74
  %623 = vmatprep.subr.mxu0 0.0
  %624 = vmatpush1.msra.mxu0 %v75
  %625 = vmatprep.subr.mxu0 0.0
  %626 = vmatpush1.msra.mxu0 0.0
  %627 = vmatprep.subr.mxu0 0.0
  %628 = vmatpush1.msra.mxu0 0.0
  %629 = vmatprep.subr.mxu0 0.0
  %630 = vmatpush1.msra.mxu0 0.0
  %631 = vmatprep.subr.mxu0 0.0
  %632 = vmatpush1.msra.mxu0 0.0
  %633 = vmatprep.subr.mxu0 0.0
  %634 = vmatpush1.msra.mxu0 0.0
  %635 = vmatprep.subr.mxu0 0.0
  %636 = vmatpush1.msra.mxu0 0.0
  %637 = vmatprep.subr.mxu0 0.0
  %638 = vmatpush1.msra.mxu0 0.0
  %639 = vmatprep.subr.mxu0 0.0
  %640 = vmatpush1.msra.mxu0 0.0
  %641 = vmatprep.subr.mxu0 0.0
  %642 = vmatpush1.msra.mxu0 0.0
  %643 = vmatprep.subr.mxu0 0.0
  %644 = vmatpush1.msra.mxu0 0.0
  %645 = vmatprep.subr.mxu0 0.0
  %646 = vmatpush1.msra.mxu0 0.0
  %647 = vmatprep.subr.mxu0 0.0
  %648 = vmatpush1.msra.mxu0 0.0
  %649 = vmatprep.subr.mxu0 0.0
  %650 = vmatpush1.msra.mxu0 0.0
  %651 = vmatprep.subr.mxu0 0.0
  %652 = vmatpush1.msra.mxu0 0.0
  %653 = vmatprep.subr.mxu0 0.0
  %654 = vmatpush1.msra.mxu0 0.0
  %655 = vmatprep.subr.mxu0 0.0
  %656 = vmatpush1.msra.mxu0 0.0
  %657 = vmatprep.subr.mxu0 0.0
  %658 = vmatpush1.msra.mxu0 0.0
  %659 = vmatprep.subr.mxu0 0.0
  %660 = vmatpush1.msra.mxu0 0.0
  %661 = vmatprep.subr.mxu0 0.0
  %662 = vmatpush1.msra.mxu0 0.0
  %663 = vmatprep.subr.mxu0 0.0
  %664 = vmatpush1.msra.mxu0 0.0
  %665 = vmatprep.subr.mxu0 0.0
  %666 = vmatpush1.msra.mxu0 0.0
  %667 = vmatprep.subr.mxu0 0.0
  %668 = vmatpush1.msra.mxu0 0.0
  %669 = vmatprep.subr.mxu0 0.0
  %670 = vmatpush1.msra.mxu0 0.0
  %671 = vmatprep.subr.mxu0 0.0
  %672 = vmatpush1.msra.mxu0 0.0
  %673 = vmatprep.subr.mxu0 0.0
  %674 = vmatpush1.msra.mxu0 0.0
  %675 = vmatprep.subr.mxu0 0.0
  %676 = vmatpush1.msra.mxu0 0.0
  %677 = vmatprep.subr.mxu0 0.0
  %678 = vmatpush1.msra.mxu0 0.0
  %679 = vmatprep.subr.mxu0 0.0
  %680 = vmatpush1.msra.mxu0 0.0
  %681 = vmatprep.subr.mxu0 0.0
  %682 = vmatpush1.msra.mxu0 0.0
  %683 = vmatprep.subr.mxu0 0.0
  %684 = vmatpush1.msra.mxu0 0.0
  %685 = vmatprep.mubr.f32.mxu0 0.0
  %686 = vmatmul.mubr.f32.gmra.mrb[0].mxu0 %v619
  %v687 = vpop.f32.mrb[0].mxu0
  %v688 = vadd.f32 0.0, %v687
  %v689 = vpop.f32.mrb[0].mxu0
  %690 = vdwg.mxu0
  %v692 = vsel %vm595, %v617, 0
  %694 = vmatprep.subr.mxu0 0.0
  %695 = vmatpush1.msra.mxu0 %v76
  %696 = vmatprep.subr.mxu0 0.0
  %697 = vmatpush1.msra.mxu0 %v77
  %698 = vmatprep.subr.mxu0 0.0
  %699 = vmatpush1.msra.mxu0 0.0
  %700 = vmatprep.subr.mxu0 0.0
  %701 = vmatpush1.msra.mxu0 0.0
  %702 = vmatprep.subr.mxu0 0.0
  %703 = vmatpush1.msra.mxu0 0.0
  %704 = vmatprep.subr.mxu0 0.0
  %705 = vmatpush1.msra.mxu0 0.0
  %706 = vmatprep.subr.mxu0 0.0
  %707 = vmatpush1.msra.mxu0 0.0
  %708 = vmatprep.subr.mxu0 0.0
  %709 = vmatpush1.msra.mxu0 0.0
  %710 = vmatprep.subr.mxu0 0.0
  %711 = vmatpush1.msra.mxu0 0.0
  %712 = vmatprep.subr.mxu0 0.0
  %713 = vmatpush1.msra.mxu0 0.0
  %714 = vmatprep.subr.mxu0 0.0
  %715 = vmatpush1.msra.mxu0 0.0
  %716 = vmatprep.subr.mxu0 0.0
  %717 = vmatpush1.msra.mxu0 0.0
  %718 = vmatprep.subr.mxu0 0.0
  %719 = vmatpush1.msra.mxu0 0.0
  %720 = vmatprep.subr.mxu0 0.0
  %721 = vmatpush1.msra.mxu0 0.0
  %722 = vmatprep.subr.mxu0 0.0
  %723 = vmatpush1.msra.mxu0 0.0
  %724 = vmatprep.subr.mxu0 0.0
  %725 = vmatpush1.msra.mxu0 0.0
  %726 = vmatprep.subr.mxu0 0.0
  %727 = vmatpush1.msra.mxu0 0.0
  %728 = vmatprep.subr.mxu0 0.0
  %729 = vmatpush1.msra.mxu0 0.0
  %730 = vmatprep.subr.mxu0 0.0
  %731 = vmatpush1.msra.mxu0 0.0
  %732 = vmatprep.subr.mxu0 0.0
  %733 = vmatpush1.msra.mxu0 0.0
  %734 = vmatprep.subr.mxu0 0.0
  %735 = vmatpush1.msra.mxu0 0.0
  %736 = vmatprep.subr.mxu0 0.0
  %737 = vmatpush1.msra.mxu0 0.0
  %738 = vmatprep.subr.mxu0 0.0
  %739 = vmatpush1.msra.mxu0 0.0
  %740 = vmatprep.subr.mxu0 0.0
  %741 = vmatpush1.msra.mxu0 0.0
  %742 = vmatprep.subr.mxu0 0.0
  %743 = vmatpush1.msra.mxu0 0.0
  %744 = vmatprep.subr.mxu0 0.0
  %745 = vmatpush1.msra.mxu0 0.0
  %746 = vmatprep.subr.mxu0 0.0
  %747 = vmatpush1.msra.mxu0 0.0
  %748 = vmatprep.subr.mxu0 0.0
  %749 = vmatpush1.msra.mxu0 0.0
  %750 = vmatprep.subr.mxu0 0.0
  %751 = vmatpush1.msra.mxu0 0.0
  %752 = vmatprep.subr.mxu0 0.0
  %753 = vmatpush1.msra.mxu0 0.0
  %754 = vmatprep.subr.mxu0 0.0
  %755 = vmatpush1.msra.mxu0 0.0
  %756 = vmatprep.subr.mxu0 0.0
  %757 = vmatpush1.msra.mxu0 0.0
  %758 = vmatprep.mubr.f32.mxu0 0.0
  %759 = vmatmul.mubr.f32.gmra.mrb[0].mxu0 %v692
  %v760 = vpop.f32.mrb[0].mxu0
  %v761 = vadd.f32 0.0, %v760
  %v762 = vpop.f32.mrb[0].mxu0
  %763 = vdwg.mxu0
  %v764 = vmul.f32 %v688, 4.0
  %v765 = vmul.f32 %v761, 4.0
  %v766 = vld [vmem:[%s9] sm:$0xff]
  %v767 = vld [vmem:[%s9 + $0x8] sm:$0xff]
  %v768 = vld [vmem:[%s9 + $0x10] sm:$0xff]
  %v769 = vld [vmem:[%s9 + $0x18] sm:$0xff]
  %v770 = vld [vmem:[%s10] sm:$0x1]
  %v772 = vlaneseq
  %v773 = vshrl.u32 %v772, 7
  %v774 = vsub.s32 0, %v773
  %v775 = vrot.slane %v770, %v774
  %v778 = vsel %vm89, %v764, 0
  %v781 = vsel %vm89, %v765, 0
  %783 = vmatprep.subr.mxu0 0.0
  %784 = vmatpush1.msra.mxu0 %v766
  %785 = vmatprep.subr.mxu0 0.0
  %786 = vmatpush1.msra.mxu0 %v767
  %787 = vmatprep.subr.mxu0 0.0
  %788 = vmatpush1.msra.mxu0 %v768
  %789 = vmatprep.subr.mxu0 0.0
  %790 = vmatpush1.msra.mxu0 %v769
  %791 = vmatprep.subr.mxu0 0.0
  %792 = vmatpush1.msra.mxu0 0.0
  %793 = vmatprep.subr.mxu0 0.0
  %794 = vmatpush1.msra.mxu0 0.0
  %795 = vmatprep.subr.mxu0 0.0
  %796 = vmatpush1.msra.mxu0 0.0
  %797 = vmatprep.subr.mxu0 0.0
  %798 = vmatpush1.msra.mxu0 0.0
  %799 = vmatprep.subr.mxu0 0.0
  %800 = vmatpush1.msra.mxu0 0.0
  %801 = vmatprep.subr.mxu0 0.0
  %802 = vmatpush1.msra.mxu0 0.0
  %803 = vmatprep.subr.mxu0 0.0
  %804 = vmatpush1.msra.mxu0 0.0
  %805 = vmatprep.subr.mxu0 0.0
  %806 = vmatpush1.msra.mxu0 0.0
  %807 = vmatprep.subr.mxu0 0.0
  %808 = vmatpush1.msra.mxu0 0.0
  %809 = vmatprep.subr.mxu0 0.0
  %810 = vmatpush1.msra.mxu0 0.0
  %811 = vmatprep.subr.mxu0 0.0
  %812 = vmatpush1.msra.mxu0 0.0
  %813 = vmatprep.subr.mxu0 0.0
  %814 = vmatpush1.msra.mxu0 0.0
  %815 = vmatprep.subr.mxu0 0.0
  %816 = vmatpush1.msra.mxu0 0.0
  %817 = vmatprep.subr.mxu0 0.0
  %818 = vmatpush1.msra.mxu0 0.0
  %819 = vmatprep.subr.mxu0 0.0
  %820 = vmatpush1.msra.mxu0 0.0
  %821 = vmatprep.subr.mxu0 0.0
  %822 = vmatpush1.msra.mxu0 0.0
  %823 = vmatprep.subr.mxu0 0.0
  %824 = vmatpush1.msra.mxu0 0.0
  %825 = vmatprep.subr.mxu0 0.0
  %826 = vmatpush1.msra.mxu0 0.0
  %827 = vmatprep.subr.mxu0 0.0
  %828 = vmatpush1.msra.mxu0 0.0
  %829 = vmatprep.subr.mxu0 0.0
  %830 = vmatpush1.msra.mxu0 0.0
  %831 = vmatprep.subr.mxu0 0.0
  %832 = vmatpush1.msra.mxu0 0.0
  %833 = vmatprep.subr.mxu0 0.0
  %834 = vmatpush1.msra.mxu0 0.0
  %835 = vmatprep.subr.mxu0 0.0
  %836 = vmatpush1.msra.mxu0 0.0
  %837 = vmatprep.subr.mxu0 0.0
  %838 = vmatpush1.msra.mxu0 0.0
  %839 = vmatprep.subr.mxu0 0.0
  %840 = vmatpush1.msra.mxu0 0.0
  %841 = vmatprep.subr.mxu0 0.0
  %842 = vmatpush1.msra.mxu0 0.0
  %843 = vmatprep.subr.mxu0 0.0
  %844 = vmatpush1.msra.mxu0 0.0
  %845 = vmatprep.subr.mxu0 0.0
  %846 = vmatpush1.msra.mxu0 0.0
  %847 = vmatprep.mubr.f32.mxu0 0.0
  %848 = vmatmul.mubr.f32.gmra.mrb[0].mxu0 %v778
  %v849 = vpop.f32.mrb[0].mxu0
  %v850 = vadd.f32 %v775, %v849
  %v851 = vpop.f32.mrb[0].mxu0
  %852 = vmatprep.mubr.f32.mxu0 0.0
  %853 = vmatmul.mubr.f32.gmra.mrb[0].mxu0 %v781
  %v854 = vpop.f32.mrb[0].mxu0
  %v855 = vadd.f32 %v775, %v854
  %v856 = vpop.f32.mrb[0].mxu0
  %857 = vdwg.mxu0
  %v858 = vadd.f32 %v850, %v335
  %v859 = vadd.f32 %v855, %v336
  %v860 = vmul.f32 %v858, 0.70710677
  %v861 = vmul.f32 %v859, 0.70710677
  %v862 = vadd.f32 %v860, %v163
  %v863 = vadd.f32 %v861, %v168
  %v864 = vmul.f32 %v862, 0.70710677
  %v865 = vmul.f32 %v863, 0.70710677
  %v868 = vrot.slane %v864, 6
  %v869 = vrot.slane %v865, 6
  %v872 = vsel %vm177, 0.0, %v868
  %v873 = vsel %vm177, 0.0, %v869
  %v876 = vrot.slane %v872, 1
  %v877 = vrot.slane %v868, 1
  %v878 = vsel %vm182, %v876, %v877
  %v879 = vrot.slane %v873, 1
  %v880 = vrot.slane %v869, 1
  %v881 = vsel %vm182, %v879, %v880
  %882 = vrot.lane.b32.xlu0 %v878, 64
  %v883 = vpop.permute.xlu0 %882
  %884 = vrot.lane.b32.xlu0 %v881, 64
  %v885 = vpop.permute.xlu0 %884
  %v888 = vrot.slane %v872, 2
  %v889 = vrot.slane %v868, 2
  %v890 = vsel %vm195, %v888, %v889
  %v891 = vrot.slane %v873, 2
  %v892 = vrot.slane %v869, 2
  %v893 = vsel %vm195, %v891, %v892
  %v894 = vsel %vm202, %v872, %v883
  %v895 = vsel %vm202, %v873, %v885
  %v896 = vld [vmem:[%s11] sm:$0xff]
  %v897 = vld [vmem:[%s11 + $0x8] sm:$0xff]
  %v898 = vld [vmem:[%s11 + $0x10] sm:$0xff]
  %v899 = vld [vmem:[%s11 + $0x18] sm:$0xff]
  %v900 = vld [vmem:[%s11 + $0x20] sm:$0xff]
  %v901 = vld [vmem:[%s11 + $0x28] sm:$0xff]
  %v902 = vld [vmem:[%s11 + $0x30] sm:$0xff]
  %v903 = vld [vmem:[%s11 + $0x38] sm:$0xff]
  %v904 = vld [vmem:[%s11 + $0x40] sm:$0xff]
  %v905 = vld [vmem:[%s11 + $0x48] sm:$0xff]
  %v906 = vld [vmem:[%s11 + $0x50] sm:$0xff]
  %v907 = vld [vmem:[%s11 + $0x58] sm:$0xff]
  %v908 = vld [vmem:[%s11 + $0x60] sm:$0xff]
  %v909 = vld [vmem:[%s11 + $0x68] sm:$0xff]
  %v910 = vld [vmem:[%s11 + $0x70] sm:$0xff]
  %v911 = vld [vmem:[%s11 + $0x78] sm:$0xff]
  %v912 = vld [vmem:[%s11 + $0x80] sm:$0xff]
  %v913 = vld [vmem:[%s11 + $0x88] sm:$0xff]
  %v914 = vld [vmem:[%s11 + $0x90] sm:$0xff]
  %v915 = vld [vmem:[%s11 + $0x98] sm:$0xff]
  %v916 = vld [vmem:[%s11 + $0xa0] sm:$0xff]
  %v917 = vld [vmem:[%s11 + $0xa8] sm:$0xff]
  %v918 = vld [vmem:[%s11 + $0xb0] sm:$0xff]
  %v919 = vld [vmem:[%s11 + $0xb8] sm:$0xff]
  %v920 = vld [vmem:[%s12] sm:$0x1]
  %v922 = vlaneseq
  %v923 = vshrl.u32 %v922, 7
  %v924 = vsub.s32 0, %v923
  %v925 = vrot.slane %v920, %v924
  %v927 = vsel %vm202, %v890, 0
  %v929 = vsel %vm202, %v893, 0
  %931 = vmatprep.subr.mxu0 0.0
  %932 = vmatpush1.msra.mxu0 %v896
  %933 = vmatprep.subr.mxu0 0.0
  %934 = vmatpush1.msra.mxu0 %v897
  %935 = vmatprep.subr.mxu0 0.0
  %936 = vmatpush1.msra.mxu0 %v898
  %937 = vmatprep.subr.mxu0 0.0
  %938 = vmatpush1.msra.mxu0 %v899
  %939 = vmatprep.subr.mxu0 0.0
  %940 = vmatpush1.msra.mxu0 %v900
  %941 = vmatprep.subr.mxu0 0.0
  %942 = vmatpush1.msra.mxu0 %v901
  %943 = vmatprep.subr.mxu0 0.0
  %944 = vmatpush1.msra.mxu0 %v902
  %945 = vmatprep.subr.mxu0 0.0
  %946 = vmatpush1.msra.mxu0 %v903
  %947 = vmatprep.subr.mxu0 0.0
  %948 = vmatpush1.msra.mxu0 %v904
  %949 = vmatprep.subr.mxu0 0.0
  %950 = vmatpush1.msra.mxu0 %v905
  %951 = vmatprep.subr.mxu0 0.0
  %952 = vmatpush1.msra.mxu0 %v906
  %953 = vmatprep.subr.mxu0 0.0
  %954 = vmatpush1.msra.mxu0 %v907
  %955 = vmatprep.subr.mxu0 0.0
  %956 = vmatpush1.msra.mxu0 %v908
  %957 = vmatprep.subr.mxu0 0.0
  %958 = vmatpush1.msra.mxu0 %v909
  %959 = vmatprep.subr.mxu0 0.0
  %960 = vmatpush1.msra.mxu0 %v910
  %961 = vmatprep.subr.mxu0 0.0
  %962 = vmatpush1.msra.mxu0 %v911
  %963 = vmatprep.subr.mxu0 0.0
  %964 = vmatpush1.msra.mxu0 %v912
  %965 = vmatprep.subr.mxu0 0.0
  %966 = vmatpush1.msra.mxu0 %v913
  %967 = vmatprep.subr.mxu0 0.0
  %968 = vmatpush1.msra.mxu0 %v914
  %969 = vmatprep.subr.mxu0 0.0
  %970 = vmatpush1.msra.mxu0 %v915
  %971 = vmatprep.subr.mxu0 0.0
  %972 = vmatpush1.msra.mxu0 %v916
  %973 = vmatprep.subr.mxu0 0.0
  %974 = vmatpush1.msra.mxu0 %v917
  %975 = vmatprep.subr.mxu0 0.0
  %976 = vmatpush1.msra.mxu0 %v918
  %977 = vmatprep.subr.mxu0 0.0
  %978 = vmatpush1.msra.mxu0 %v919
  %979 = vmatprep.subr.mxu0 0.0
  %980 = vmatpush1.msra.mxu0 0.0
  %981 = vmatprep.subr.mxu0 0.0
  %982 = vmatpush1.msra.mxu0 0.0
  %983 = vmatprep.subr.mxu0 0.0
  %984 = vmatpush1.msra.mxu0 0.0
  %985 = vmatprep.subr.mxu0 0.0
  %986 = vmatpush1.msra.mxu0 0.0
  %987 = vmatprep.subr.mxu0 0.0
  %988 = vmatpush1.msra.mxu0 0.0
  %989 = vmatprep.subr.mxu0 0.0
  %990 = vmatpush1.msra.mxu0 0.0
  %991 = vmatprep.subr.mxu0 0.0
  %992 = vmatpush1.msra.mxu0 0.0
  %993 = vmatprep.subr.mxu0 0.0
  %994 = vmatpush1.msra.mxu0 0.0
  %995 = vmatprep.mubr.f32.mxu0 %v927
  %996 = vmatmul.mubr.f32.gmra.mrb[0].mxu0 %v894
  %v997 = vpop.f32.mrb[0].mxu0
  %v998 = vadd.f32 %v925, %v997
  %v999 = vpop.f32.mrb[0].mxu0
  %1000 = vmatprep.mubr.f32.mxu0 %v929
  %1001 = vmatmul.mubr.f32.gmra.mrb[0].mxu0 %v895
  %v1002 = vpop.f32.mrb[0].mxu0
  %v1003 = vadd.f32 %v925, %v1002
  %v1004 = vpop.f32.mrb[0].mxu0
  %1005 = vdwg.mxu0
  %v1006 = vxor.u32 %v998, 2147483648
  %v1007 = vxor.u32 %v1003, 2147483648
  %v1008 = vmul.f32 %v1006, 1.442695
  %v1009 = vpow.pop %v1008
  %v1010 = vmul.f32 %v1007, 1.442695
  %v1011 = vpow.pop %v1010
  %v1012 = vadd.f32 %v1009, 1.0
  %v1013 = vadd.f32 %v1011, 1.0
  %v1014 = vrcp.pop %v1012
  %v1015 = vmul.f32 1.0, %v1014
  %v1016 = vrcp.pop %v1013
  %v1017 = vmul.f32 1.0, %v1016
  %1020 = vrot.lane.b32.xlu0 %v1015, 64
  %v1021 = vpop.permute.xlu0 %1020
  %1022 = vrot.lane.b32.xlu0 %v1017, 64
  %v1023 = vpop.permute.xlu0 %1022
  %v1026 = vmul.f32 %v998, %v1021
  %v1027 = vmul.f32 %v1003, %v1023
  %v1028 = vld [vmem:[%s13] sm:$0xff]
  %v1029 = vld [vmem:[%s13 + $0x8] sm:$0xff]
  %v1030 = vld [vmem:[%s13 + $0x10] sm:$0xff]
  %v1031 = vld [vmem:[%s13 + $0x18] sm:$0xff]
  %v1032 = vld [vmem:[%s13 + $0x20] sm:$0xff]
  %v1033 = vld [vmem:[%s13 + $0x28] sm:$0xff]
  %v1034 = vld [vmem:[%s13 + $0x30] sm:$0xff]
  %v1035 = vld [vmem:[%s13 + $0x38] sm:$0xff]
  %v1036 = vld [vmem:[%s14] sm:$0x1]
  %v1038 = vlaneseq
  %v1039 = vshrl.u32 %v1038, 7
  %v1040 = vsub.s32 0, %v1039
  %v1041 = vrot.slane %v1036, %v1040
  %v1044 = vsel %vm202, %v1026, 0
  %v1047 = vsel %vm202, %v1027, 0
  %1049 = vmatprep.subr.mxu0 0.0
  %1050 = vmatpush1.msra.mxu0 %v1028
  %1051 = vmatprep.subr.mxu0 0.0
  %1052 = vmatpush1.msra.mxu0 %v1029
  %1053 = vmatprep.subr.mxu0 0.0
  %1054 = vmatpush1.msra.mxu0 %v1030
  %1055 = vmatprep.subr.mxu0 0.0
  %1056 = vmatpush1.msra.mxu0 %v1031
  %1057 = vmatprep.subr.mxu0 0.0
  %1058 = vmatpush1.msra.mxu0 %v1032
  %1059 = vmatprep.subr.mxu0 0.0
  %1060 = vmatpush1.msra.mxu0 %v1033
  %1061 = vmatprep.subr.mxu0 0.0
  %1062 = vmatpush1.msra.mxu0 %v1034
  %1063 = vmatprep.subr.mxu0 0.0
  %1064 = vmatpush1.msra.mxu0 %v1035
  %1065 = vmatprep.subr.mxu0 0.0
  %1066 = vmatpush1.msra.mxu0 0.0
  %1067 = vmatprep.subr.mxu0 0.0
  %1068 = vmatpush1.msra.mxu0 0.0
  %1069 = vmatprep.subr.mxu0 0.0
  %1070 = vmatpush1.msra.mxu0 0.0
  %1071 = vmatprep.subr.mxu0 0.0
  %1072 = vmatpush1.msra.mxu0 0.0
  %1073 = vmatprep.subr.mxu0 0.0
  %1074 = vmatpush1.msra.mxu0 0.0
  %1075 = vmatprep.subr.mxu0 0.0
  %1076 = vmatpush1.msra.mxu0 0.0
  %1077 = vmatprep.subr.mxu0 0.0
  %1078 = vmatpush1.msra.mxu0 0.0
  %1079 = vmatprep.subr.mxu0 0.0
  %1080 = vmatpush1.msra.mxu0 0.0
  %1081 = vmatprep.subr.mxu0 0.0
  %1082 = vmatpush1.msra.mxu0 0.0
  %1083 = vmatprep.subr.mxu0 0.0
  %1084 = vmatpush1.msra.mxu0 0.0
  %1085 = vmatprep.subr.mxu0 0.0
  %1086 = vmatpush1.msra.mxu0 0.0
  %1087 = vmatprep.subr.mxu0 0.0
  %1088 = vmatpush1.msra.mxu0 0.0
  %1089 = vmatprep.subr.mxu0 0.0
  %1090 = vmatpush1.msra.mxu0 0.0
  %1091 = vmatprep.subr.mxu0 0.0
  %1092 = vmatpush1.msra.mxu0 0.0
  %1093 = vmatprep.subr.mxu0 0.0
  %1094 = vmatpush1.msra.mxu0 0.0
  %1095 = vmatprep.subr.mxu0 0.0
  %1096 = vmatpush1.msra.mxu0 0.0
  %1097 = vmatprep.subr.mxu0 0.0
  %1098 = vmatpush1.msra.mxu0 0.0
  %1099 = vmatprep.subr.mxu0 0.0
  %1100 = vmatpush1.msra.mxu0 0.0
  %1101 = vmatprep.subr.mxu0 0.0
  %1102 = vmatpush1.msra.mxu0 0.0
  %1103 = vmatprep.subr.mxu0 0.0
  %1104 = vmatpush1.msra.mxu0 0.0
  %1105 = vmatprep.subr.mxu0 0.0
  %1106 = vmatpush1.msra.mxu0 0.0
  %1107 = vmatprep.subr.mxu0 0.0
  %1108 = vmatpush1.msra.mxu0 0.0
  %1109 = vmatprep.subr.mxu0 0.0
  %1110 = vmatpush1.msra.mxu0 0.0
  %1111 = vmatprep.subr.mxu0 0.0
  %1112 = vmatpush1.msra.mxu0 0.0
  %1113 = vmatprep.mubr.f32.mxu0 0.0
  %1114 = vmatmul.mubr.f32.gmra.mrb[0].mxu0 %v1044
  %v1115 = vpop.f32.mrb[0].mxu0
  %v1116 = vadd.f32 %v1041, %v1115
  %v1117 = vpop.f32.mrb[0].mxu0
  %1118 = vmatprep.mubr.f32.mxu0 0.0
  %1119 = vmatmul.mubr.f32.gmra.mrb[0].mxu0 %v1047
  %v1120 = vpop.f32.mrb[0].mxu0
  %v1121 = vadd.f32 %v1041, %v1120
  %v1122 = vpop.f32.mrb[0].mxu0
  %1123 = vdwg.mxu0
  %v1124 = vadd.f32 %v1116, %v68
  %v1125 = vadd.f32 %v1121, %v69
  %v1126 = vmul.f32 %v1124, 0.70710677
  %v1127 = vmul.f32 %v1125, 0.70710677
  %v1129 = vsel %vm89, %v1126, 0
  %1131 = vmatprep.subr.mxu0 0.0
  %1132 = vmatpush1.xpose.msra.mxu0 %v441
  %1133 = vmatprep.subr.mxu0 0.0
  %1134 = vmatpush1.xpose.msra.mxu0 %v444
  %1135 = vmatprep.subr.mxu0 0.0
  %1136 = vmatpush1.xpose.msra.mxu0 0.0
  %1137 = vmatprep.subr.mxu0 0.0
  %1138 = vmatpush1.xpose.msra.mxu0 0.0
  %1139 = vmatprep.subr.mxu0 0.0
  %1140 = vmatpush1.xpose.msra.mxu0 0.0
  %1141 = vmatprep.subr.mxu0 0.0
  %1142 = vmatpush1.xpose.msra.mxu0 0.0
  %1143 = vmatprep.subr.mxu0 0.0
  %1144 = vmatpush1.xpose.msra.mxu0 0.0
  %1145 = vmatprep.subr.mxu0 0.0
  %1146 = vmatpush1.xpose.msra.mxu0 0.0
  %1147 = vmatprep.subr.mxu0 0.0
  %1148 = vmatpush1.xpose.msra.mxu0 0.0
  %1149 = vmatprep.subr.mxu0 0.0
  %1150 = vmatpush1.xpose.msra.mxu0 0.0
  %1151 = vmatprep.subr.mxu0 0.0
  %1152 = vmatpush1.xpose.msra.mxu0 0.0
  %1153 = vmatprep.subr.mxu0 0.0
  %1154 = vmatpush1.xpose.msra.mxu0 0.0
  %1155 = vmatprep.subr.mxu0 0.0
  %1156 = vmatpush1.xpose.msra.mxu0 0.0
  %1157 = vmatprep.subr.mxu0 0.0
  %1158 = vmatpush1.xpose.msra.mxu0 0.0
  %1159 = vmatprep.subr.mxu0 0.0
  %1160 = vmatpush1.xpose.msra.mxu0 0.0
  %1161 = vmatprep.subr.mxu0 0.0
  %1162 = vmatpush1.xpose.msra.mxu0 0.0
  %1163 = vmatprep.subr.mxu0 0.0
  %1164 = vmatpush1.xpose.msra.mxu0 0.0
  %1165 = vmatprep.subr.mxu0 0.0
  %1166 = vmatpush1.xpose.msra.mxu0 0.0
  %1167 = vmatprep.subr.mxu0 0.0
  %1168 = vmatpush1.xpose.msra.mxu0 0.0
  %1169 = vmatprep.subr.mxu0 0.0
  %1170 = vmatpush1.xpose.msra.mxu0 0.0
  %1171 = vmatprep.subr.mxu0 0.0
  %1172 = vmatpush1.xpose.msra.mxu0 0.0
  %1173 = vmatprep.subr.mxu0 0.0
  %1174 = vmatpush1.xpose.msra.mxu0 0.0
  %1175 = vmatprep.subr.mxu0 0.0
  %1176 = vmatpush1.xpose.msra.mxu0 0.0
  %1177 = vmatprep.subr.mxu0 0.0
  %1178 = vmatpush1.xpose.msra.mxu0 0.0
  %1179 = vmatprep.subr.mxu0 0.0
  %1180 = vmatpush1.xpose.msra.mxu0 0.0
  %1181 = vmatprep.subr.mxu0 0.0
  %1182 = vmatpush1.xpose.msra.mxu0 0.0
  %1183 = vmatprep.subr.mxu0 0.0
  %1184 = vmatpush1.xpose.msra.mxu0 0.0
  %1185 = vmatprep.subr.mxu0 0.0
  %1186 = vmatpush1.xpose.msra.mxu0 0.0
  %1187 = vmatprep.subr.mxu0 0.0
  %1188 = vmatpush1.xpose.msra.mxu0 0.0
  %1189 = vmatprep.subr.mxu0 0.0
  %1190 = vmatpush1.xpose.msra.mxu0 0.0
  %1191 = vmatprep.subr.mxu0 0.0
  %1192 = vmatpush1.xpose.msra.mxu0 0.0
  %1193 = vmatprep.subr.mxu0 0.0
  %1194 = vmatpush1.xpose.msra.mxu0 0.0
  %1195 = vmatprep.mubr.f32.mxu0 0.0
  %1196 = vmatmul.mubr.f32.gmra.mrb[0].mxu0 %v1129
  %v1197 = vpop.f32.mrb[0].mxu0
  %v1198 = vadd.f32 0.0, %v1197
  %v1199 = vpop.f32.mrb[0].mxu0
  %1200 = vdwg.mxu0
  %v1202 = vsel %vm89, %v1127, 0
  %1204 = vmatprep.subr.mxu0 0.0
  %1205 = vmatpush1.xpose.msra.mxu0 %v520
  %1206 = vmatprep.subr.mxu0 0.0
  %1207 = vmatpush1.xpose.msra.mxu0 %v523
  %1208 = vmatprep.subr.mxu0 0.0
  %1209 = vmatpush1.xpose.msra.mxu0 0.0
  %1210 = vmatprep.subr.mxu0 0.0
  %1211 = vmatpush1.xpose.msra.mxu0 0.0
  %1212 = vmatprep.subr.mxu0 0.0
  %1213 = vmatpush1.xpose.msra.mxu0 0.0
  %1214 = vmatprep.subr.mxu0 0.0
  %1215 = vmatpush1.xpose.msra.mxu0 0.0
  %1216 = vmatprep.subr.mxu0 0.0
  %1217 = vmatpush1.xpose.msra.mxu0 0.0
  %1218 = vmatprep.subr.mxu0 0.0
  %1219 = vmatpush1.xpose.msra.mxu0 0.0
  %1220 = vmatprep.subr.mxu0 0.0
  %1221 = vmatpush1.xpose.msra.mxu0 0.0
  %1222 = vmatprep.subr.mxu0 0.0
  %1223 = vmatpush1.xpose.msra.mxu0 0.0
  %1224 = vmatprep.subr.mxu0 0.0
  %1225 = vmatpush1.xpose.msra.mxu0 0.0
  %1226 = vmatprep.subr.mxu0 0.0
  %1227 = vmatpush1.xpose.msra.mxu0 0.0
  %1228 = vmatprep.subr.mxu0 0.0
  %1229 = vmatpush1.xpose.msra.mxu0 0.0
  %1230 = vmatprep.subr.mxu0 0.0
  %1231 = vmatpush1.xpose.msra.mxu0 0.0
  %1232 = vmatprep.subr.mxu0 0.0
  %1233 = vmatpush1.xpose.msra.mxu0 0.0
  %1234 = vmatprep.subr.mxu0 0.0
  %1235 = vmatpush1.xpose.msra.mxu0 0.0
  %1236 = vmatprep.subr.mxu0 0.0
  %1237 = vmatpush1.xpose.msra.mxu0 0.0
  %1238 = vmatprep.subr.mxu0 0.0
  %1239 = vmatpush1.xpose.msra.mxu0 0.0
  %1240 = vmatprep.subr.mxu0 0.0
  %1241 = vmatpush1.xpose.msra.mxu0 0.0
  %1242 = vmatprep.subr.mxu0 0.0
  %1243 = vmatpush1.xpose.msra.mxu0 0.0
  %1244 = vmatprep.subr.mxu0 0.0
  %1245 = vmatpush1.xpose.msra.mxu0 0.0
  %1246 = vmatprep.subr.mxu0 0.0
  %1247 = vmatpush1.xpose.msra.mxu0 0.0
  %1248 = vmatprep.subr.mxu0 0.0
  %1249 = vmatpush1.xpose.msra.mxu0 0.0
  %1250 = vmatprep.subr.mxu0 0.0
  %1251 = vmatpush1.xpose.msra.mxu0 0.0
  %1252 = vmatprep.subr.mxu0 0.0
  %1253 = vmatpush1.xpose.msra.mxu0 0.0
  %1254 = vmatprep.subr.mxu0 0.0
  %1255 = vmatpush1.xpose.msra.mxu0 0.0
  %1256 = vmatprep.subr.mxu0 0.0
  %1257 = vmatpush1.xpose.msra.mxu0 0.0
  %1258 = vmatprep.subr.mxu0 0.0
  %1259 = vmatpush1.xpose.msra.mxu0 0.0
  %1260 = vmatprep.subr.mxu0 0.0
  %1261 = vmatpush1.xpose.msra.mxu0 0.0
  %1262 = vmatprep.subr.mxu0 0.0
  %1263 = vmatpush1.xpose.msra.mxu0 0.0
  %1264 = vmatprep.subr.mxu0 0.0
  %1265 = vmatpush1.xpose.msra.mxu0 0.0
  %1266 = vmatprep.subr.mxu0 0.0
  %1267 = vmatpush1.xpose.msra.mxu0 0.0
  %1268 = vmatprep.mubr.f32.mxu0 0.0
  %1269 = vmatmul.mubr.f32.gmra.mrb[0].mxu0 %v1202
  %v1270 = vpop.f32.mrb[0].mxu0
  %v1271 = vadd.f32 0.0, %v1270
  %v1272 = vpop.f32.mrb[0].mxu0
  %1273 = vdwg.mxu0
  %v1274 = vsel %vm595, %v1198, -inf
  %1275 = vmax.xlane.f32.xlu0 %v1274
  %v1276 = vpop.xlane.xlu0 %1275
  %v1277 = vsel %vm595, %v1271, -inf
  %1278 = vmax.xlane.f32.xlu0 %v1277
  %v1279 = vpop.xlane.xlu0 %1278
  %v1280 = vsub.f32 %v1198, %v1276
  %v1281 = vsub.f32 %v1271, %v1279
  %v1282 = vmul.f32 %v1280, 1.442695
  %v1283 = vpow.pop %v1282
  %v1284 = vmul.f32 %v1281, 1.442695
  %v1285 = vpow.pop %v1284
  %v1286 = vsel %vm595, %v1283, 0.0
  %1287 = vadd.xlane.f32.xlu0 %v1286
  %v1288 = vpop.xlane.xlu0 %1287
  %v1289 = vsel %vm595, %v1285, 0.0
  %1290 = vadd.xlane.f32.xlu0 %v1289
  %v1291 = vpop.xlane.xlu0 %1290
  %v1292 = vrcp.pop %v1288
  %v1293 = vmul.f32 %v1283, %v1292
  %v1294 = vrcp.pop %v1291
  %v1295 = vmul.f32 %v1285, %v1294
  %v1297 = vsel %vm595, %v1293, 0
  %1299 = vmatprep.subr.mxu0 0.0
  %1300 = vmatpush1.msra.mxu0 %v74
  %1301 = vmatprep.subr.mxu0 0.0
  %1302 = vmatpush1.msra.mxu0 %v75
  %1303 = vmatprep.subr.mxu0 0.0
  %1304 = vmatpush1.msra.mxu0 0.0
  %1305 = vmatprep.subr.mxu0 0.0
  %1306 = vmatpush1.msra.mxu0 0.0
  %1307 = vmatprep.subr.mxu0 0.0
  %1308 = vmatpush1.msra.mxu0 0.0
  %1309 = vmatprep.subr.mxu0 0.0
  %1310 = vmatpush1.msra.mxu0 0.0
  %1311 = vmatprep.subr.mxu0 0.0
  %1312 = vmatpush1.msra.mxu0 0.0
  %1313 = vmatprep.subr.mxu0 0.0
  %1314 = vmatpush1.msra.mxu0 0.0
  %1315 = vmatprep.subr.mxu0 0.0
  %1316 = vmatpush1.msra.mxu0 0.0
  %1317 = vmatprep.subr.mxu0 0.0
  %1318 = vmatpush1.msra.mxu0 0.0
  %1319 = vmatprep.subr.mxu0 0.0
  %1320 = vmatpush1.msra.mxu0 0.0
  %1321 = vmatprep.subr.mxu0 0.0
  %1322 = vmatpush1.msra.mxu0 0.0
  %1323 = vmatprep.subr.mxu0 0.0
  %1324 = vmatpush1.msra.mxu0 0.0
  %1325 = vmatprep.subr.mxu0 0.0
  %1326 = vmatpush1.msra.mxu0 0.0
  %1327 = vmatprep.subr.mxu0 0.0
  %1328 = vmatpush1.msra.mxu0 0.0
  %1329 = vmatprep.subr.mxu0 0.0
  %1330 = vmatpush1.msra.mxu0 0.0
  %1331 = vmatprep.subr.mxu0 0.0
  %1332 = vmatpush1.msra.mxu0 0.0
  %1333 = vmatprep.subr.mxu0 0.0
  %1334 = vmatpush1.msra.mxu0 0.0
  %1335 = vmatprep.subr.mxu0 0.0
  %1336 = vmatpush1.msra.mxu0 0.0
  %1337 = vmatprep.subr.mxu0 0.0
  %1338 = vmatpush1.msra.mxu0 0.0
  %1339 = vmatprep.subr.mxu0 0.0
  %1340 = vmatpush1.msra.mxu0 0.0
  %1341 = vmatprep.subr.mxu0 0.0
  %1342 = vmatpush1.msra.mxu0 0.0
  %1343 = vmatprep.subr.mxu0 0.0
  %1344 = vmatpush1.msra.mxu0 0.0
  %1345 = vmatprep.subr.mxu0 0.0
  %1346 = vmatpush1.msra.mxu0 0.0
  %1347 = vmatprep.subr.mxu0 0.0
  %1348 = vmatpush1.msra.mxu0 0.0
  %1349 = vmatprep.subr.mxu0 0.0
  %1350 = vmatpush1.msra.mxu0 0.0
  %1351 = vmatprep.subr.mxu0 0.0
  %1352 = vmatpush1.msra.mxu0 0.0
  %1353 = vmatprep.subr.mxu0 0.0
  %1354 = vmatpush1.msra.mxu0 0.0
  %1355 = vmatprep.subr.mxu0 0.0
  %1356 = vmatpush1.msra.mxu0 0.0
  %1357 = vmatprep.subr.mxu0 0.0
  %1358 = vmatpush1.msra.mxu0 0.0
  %1359 = vmatprep.subr.mxu0 0.0
  %1360 = vmatpush1.msra.mxu0 0.0
  %1361 = vmatprep.subr.mxu0 0.0
  %1362 = vmatpush1.msra.mxu0 0.0
  %1363 = vmatprep.mubr.f32.mxu0 0.0
  %1364 = vmatmul.mubr.f32.gmra.mrb[0].mxu0 %v1297
  %v1365 = vpop.f32.mrb[0].mxu0
  %v1366 = vadd.f32 0.0, %v1365
  %v1367 = vpop.f32.mrb[0].mxu0
  %1368 = vdwg.mxu0
  %v1370 = vsel %vm595, %v1295, 0
  %1372 = vmatprep.subr.mxu0 0.0
  %1373 = vmatpush1.msra.mxu0 %v76
  %1374 = vmatprep.subr.mxu0 0.0
  %1375 = vmatpush1.msra.mxu0 %v77
  %1376 = vmatprep.subr.mxu0 0.0
  %1377 = vmatpush1.msra.mxu0 0.0
  %1378 = vmatprep.subr.mxu0 0.0
  %1379 = vmatpush1.msra.mxu0 0.0
  %1380 = vmatprep.subr.mxu0 0.0
  %1381 = vmatpush1.msra.mxu0 0.0
  %1382 = vmatprep.subr.mxu0 0.0
  %1383 = vmatpush1.msra.mxu0 0.0
  %1384 = vmatprep.subr.mxu0 0.0
  %1385 = vmatpush1.msra.mxu0 0.0
  %1386 = vmatprep.subr.mxu0 0.0
  %1387 = vmatpush1.msra.mxu0 0.0
  %1388 = vmatprep.subr.mxu0 0.0
  %1389 = vmatpush1.msra.mxu0 0.0
  %1390 = vmatprep.subr.mxu0 0.0
  %1391 = vmatpush1.msra.mxu0 0.0
  %1392 = vmatprep.subr.mxu0 0.0
  %1393 = vmatpush1.msra.mxu0 0.0
  %1394 = vmatprep.subr.mxu0 0.0
  %1395 = vmatpush1.msra.mxu0 0.0
  %1396 = vmatprep.subr.mxu0 0.0
  %1397 = vmatpush1.msra.mxu0 0.0
  %1398 = vmatprep.subr.mxu0 0.0
  %1399 = vmatpush1.msra.mxu0 0.0
  %1400 = vmatprep.subr.mxu0 0.0
  %1401 = vmatpush1.msra.mxu0 0.0
  %1402 = vmatprep.subr.mxu0 0.0
  %1403 = vmatpush1.msra.mxu0 0.0
  %1404 = vmatprep.subr.mxu0 0.0
  %1405 = vmatpush1.msra.mxu0 0.0
  %1406 = vmatprep.subr.mxu0 0.0
  %1407 = vmatpush1.msra.mxu0 0.0
  %1408 = vmatprep.subr.mxu0 0.0
  %1409 = vmatpush1.msra.mxu0 0.0
  %1410 = vmatprep.subr.mxu0 0.0
  %1411 = vmatpush1.msra.mxu0 0.0
  %1412 = vmatprep.subr.mxu0 0.0
  %1413 = vmatpush1.msra.mxu0 0.0
  %1414 = vmatprep.subr.mxu0 0.0
  %1415 = vmatpush1.msra.mxu0 0.0
  %1416 = vmatprep.subr.mxu0 0.0
  %1417 = vmatpush1.msra.mxu0 0.0
  %1418 = vmatprep.subr.mxu0 0.0
  %1419 = vmatpush1.msra.mxu0 0.0
  %1420 = vmatprep.subr.mxu0 0.0
  %1421 = vmatpush1.msra.mxu0 0.0
  %1422 = vmatprep.subr.mxu0 0.0
  %1423 = vmatpush1.msra.mxu0 0.0
  %1424 = vmatprep.subr.mxu0 0.0
  %1425 = vmatpush1.msra.mxu0 0.0
  %1426 = vmatprep.subr.mxu0 0.0
  %1427 = vmatpush1.msra.mxu0 0.0
  %1428 = vmatprep.subr.mxu0 0.0
  %1429 = vmatpush1.msra.mxu0 0.0
  %1430 = vmatprep.subr.mxu0 0.0
  %1431 = vmatpush1.msra.mxu0 0.0
  %1432 = vmatprep.subr.mxu0 0.0
  %1433 = vmatpush1.msra.mxu0 0.0
  %1434 = vmatprep.subr.mxu0 0.0
  %1435 = vmatpush1.msra.mxu0 0.0
  %1436 = vmatprep.mubr.f32.mxu0 0.0
  %1437 = vmatmul.mubr.f32.gmra.mrb[0].mxu0 %v1370
  %v1438 = vpop.f32.mrb[0].mxu0
  %v1439 = vadd.f32 0.0, %v1438
  %v1440 = vpop.f32.mrb[0].mxu0
  %1441 = vdwg.mxu0
  %v1442 = vmul.f32 %v1366, 4.0
  %v1443 = vmul.f32 %v1439, 4.0
  %v1444 = vld [vmem:[%s15] sm:$0xff]
  %v1445 = vld [vmem:[%s15 + $0x8] sm:$0xff]
  %v1446 = vld [vmem:[%s15 + $0x10] sm:$0xff]
  %v1447 = vld [vmem:[%s15 + $0x18] sm:$0xff]
  %v1448 = vld [vmem:[%s16] sm:$0x1]
  %v1450 = vlaneseq
  %v1451 = vshrl.u32 %v1450, 7
  %v1452 = vsub.s32 0, %v1451
  %v1453 = vrot.slane %v1448, %v1452
  %v1456 = vsel %vm89, %v1442, 0
  %v1459 = vsel %vm89, %v1443, 0
  %1461 = vmatprep.subr.mxu0 0.0
  %1462 = vmatpush1.msra.mxu0 %v1444
  %1463 = vmatprep.subr.mxu0 0.0
  %1464 = vmatpush1.msra.mxu0 %v1445
  %1465 = vmatprep.subr.mxu0 0.0
  %1466 = vmatpush1.msra.mxu0 %v1446
  %1467 = vmatprep.subr.mxu0 0.0
  %1468 = vmatpush1.msra.mxu0 %v1447
  %1469 = vmatprep.subr.mxu0 0.0
  %1470 = vmatpush1.msra.mxu0 0.0
  %1471 = vmatprep.subr.mxu0 0.0
  %1472 = vmatpush1.msra.mxu0 0.0
  %1473 = vmatprep.subr.mxu0 0.0
  %1474 = vmatpush1.msra.mxu0 0.0
  %1475 = vmatprep.subr.mxu0 0.0
  %1476 = vmatpush1.msra.mxu0 0.0
  %1477 = vmatprep.subr.mxu0 0.0
  %1478 = vmatpush1.msra.mxu0 0.0
  %1479 = vmatprep.subr.mxu0 0.0
  %1480 = vmatpush1.msra.mxu0 0.0
  %1481 = vmatprep.subr.mxu0 0.0
  %1482 = vmatpush1.msra.mxu0 0.0
  %1483 = vmatprep.subr.mxu0 0.0
  %1484 = vmatpush1.msra.mxu0 0.0
  %1485 = vmatprep.subr.mxu0 0.0
  %1486 = vmatpush1.msra.mxu0 0.0
  %1487 = vmatprep.subr.mxu0 0.0
  %1488 = vmatpush1.msra.mxu0 0.0
  %1489 = vmatprep.subr.mxu0 0.0
  %1490 = vmatpush1.msra.mxu0 0.0
  %1491 = vmatprep.subr.mxu0 0.0
  %1492 = vmatpush1.msra.mxu0 0.0
  %1493 = vmatprep.subr.mxu0 0.0
  %1494 = vmatpush1.msra.mxu0 0.0
  %1495 = vmatprep.subr.mxu0 0.0
  %1496 = vmatpush1.msra.mxu0 0.0
  %1497 = vmatprep.subr.mxu0 0.0
  %1498 = vmatpush1.msra.mxu0 0.0
  %1499 = vmatprep.subr.mxu0 0.0
  %1500 = vmatpush1.msra.mxu0 0.0
  %1501 = vmatprep.subr.mxu0 0.0
  %1502 = vmatpush1.msra.mxu0 0.0
  %1503 = vmatprep.subr.mxu0 0.0
  %1504 = vmatpush1.msra.mxu0 0.0
  %1505 = vmatprep.subr.mxu0 0.0
  %1506 = vmatpush1.msra.mxu0 0.0
  %1507 = vmatprep.subr.mxu0 0.0
  %1508 = vmatpush1.msra.mxu0 0.0
  %1509 = vmatprep.subr.mxu0 0.0
  %1510 = vmatpush1.msra.mxu0 0.0
  %1511 = vmatprep.subr.mxu0 0.0
  %1512 = vmatpush1.msra.mxu0 0.0
  %1513 = vmatprep.subr.mxu0 0.0
  %1514 = vmatpush1.msra.mxu0 0.0
  %1515 = vmatprep.subr.mxu0 0.0
  %1516 = vmatpush1.msra.mxu0 0.0
  %1517 = vmatprep.subr.mxu0 0.0
  %1518 = vmatpush1.msra.mxu0 0.0
  %1519 = vmatprep.subr.mxu0 0.0
  %1520 = vmatpush1.msra.mxu0 0.0
  %1521 = vmatprep.subr.mxu0 0.0
  %1522 = vmatpush1.msra.mxu0 0.0
  %1523 = vmatprep.subr.mxu0 0.0
  %1524 = vmatpush1.msra.mxu0 0.0
  %1525 = vmatprep.mubr.f32.mxu0 0.0
  %1526 = vmatmul.mubr.f32.gmra.mrb[0].mxu0 %v1456
  %v1527 = vpop.f32.mrb[0].mxu0
  %v1528 = vadd.f32 %v1453, %v1527
  %v1529 = vpop.f32.mrb[0].mxu0
  %1530 = vmatprep.mubr.f32.mxu0 0.0
  %1531 = vmatmul.mubr.f32.gmra.mrb[0].mxu0 %v1459
  %v1532 = vpop.f32.mrb[0].mxu0
  %v1533 = vadd.f32 %v1453, %v1532
  %v1534 = vpop.f32.mrb[0].mxu0
  %1535 = vdwg.mxu0
  %v1536 = vadd.f32 %v1528, %v1026
  %v1537 = vadd.f32 %v1533, %v1027
  %v1538 = vmul.f32 %v1536, 0.70710677
  %v1539 = vmul.f32 %v1537, 0.70710677
  %v1540 = vadd.f32 %v1538, %v864
  %v1541 = vadd.f32 %v1539, %v865
  %v1542 = vmul.f32 %v1540, 0.70710677
  %v1543 = vmul.f32 %v1541, 0.70710677
  %v1544 = vld [vmem:[%s17] sm:$0xff]
  %v1545 = vld [vmem:[%s17 + $0x8] sm:$0xff]
  %v1546 = vld [vmem:[%s17 + $0x10] sm:$0xff]
  %v1547 = vld [vmem:[%s17 + $0x18] sm:$0xff]
  %v1548 = vld [vmem:[%s17 + $0x20] sm:$0xff]
  %v1549 = vld [vmem:[%s17 + $0x28] sm:$0xff]
  %v1550 = vld [vmem:[%s17 + $0x30] sm:$0xff]
  %v1551 = vld [vmem:[%s17 + $0x38] sm:$0xff]
  %v1552 = vld [vmem:[%s18] sm:$0x1]
  %v1554 = vlaneseq
  %v1555 = vshrl.u32 %v1554, 7
  %v1556 = vsub.s32 0, %v1555
  %v1557 = vrot.slane %v1552, %v1556
  %v1560 = vsel %vm202, %v1542, 0
  %v1563 = vsel %vm202, %v1543, 0
  %1565 = vmatprep.subr.mxu0 0.0
  %1566 = vmatpush1.msra.mxu0 %v1544
  %1567 = vmatprep.subr.mxu0 0.0
  %1568 = vmatpush1.msra.mxu0 %v1545
  %1569 = vmatprep.subr.mxu0 0.0
  %1570 = vmatpush1.msra.mxu0 %v1546
  %1571 = vmatprep.subr.mxu0 0.0
  %1572 = vmatpush1.msra.mxu0 %v1547
  %1573 = vmatprep.subr.mxu0 0.0
  %1574 = vmatpush1.msra.mxu0 %v1548
  %1575 = vmatprep.subr.mxu0 0.0
  %1576 = vmatpush1.msra.mxu0 %v1549
  %1577 = vmatprep.subr.mxu0 0.0
  %1578 = vmatpush1.msra.mxu0 %v1550
  %1579 = vmatprep.subr.mxu0 0.0
  %1580 = vmatpush1.msra.mxu0 %v1551
  %1581 = vmatprep.subr.mxu0 0.0
  %1582 = vmatpush1.msra.mxu0 0.0
  %1583 = vmatprep.subr.mxu0 0.0
  %1584 = vmatpush1.msra.mxu0 0.0
  %1585 = vmatprep.subr.mxu0 0.0
  %1586 = vmatpush1.msra.mxu0 0.0
  %1587 = vmatprep.subr.mxu0 0.0
  %1588 = vmatpush1.msra.mxu0 0.0
  %1589 = vmatprep.subr.mxu0 0.0
  %1590 = vmatpush1.msra.mxu0 0.0
  %1591 = vmatprep.subr.mxu0 0.0
  %1592 = vmatpush1.msra.mxu0 0.0
  %1593 = vmatprep.subr.mxu0 0.0
  %1594 = vmatpush1.msra.mxu0 0.0
  %1595 = vmatprep.subr.mxu0 0.0
  %1596 = vmatpush1.msra.mxu0 0.0
  %1597 = vmatprep.subr.mxu0 0.0
  %1598 = vmatpush1.msra.mxu0 0.0
  %1599 = vmatprep.subr.mxu0 0.0
  %1600 = vmatpush1.msra.mxu0 0.0
  %1601 = vmatprep.subr.mxu0 0.0
  %1602 = vmatpush1.msra.mxu0 0.0
  %1603 = vmatprep.subr.mxu0 0.0
  %1604 = vmatpush1.msra.mxu0 0.0
  %1605 = vmatprep.subr.mxu0 0.0
  %1606 = vmatpush1.msra.mxu0 0.0
  %1607 = vmatprep.subr.mxu0 0.0
  %1608 = vmatpush1.msra.mxu0 0.0
  %1609 = vmatprep.subr.mxu0 0.0
  %1610 = vmatpush1.msra.mxu0 0.0
  %1611 = vmatprep.subr.mxu0 0.0
  %1612 = vmatpush1.msra.mxu0 0.0
  %1613 = vmatprep.subr.mxu0 0.0
  %1614 = vmatpush1.msra.mxu0 0.0
  %1615 = vmatprep.subr.mxu0 0.0
  %1616 = vmatpush1.msra.mxu0 0.0
  %1617 = vmatprep.subr.mxu0 0.0
  %1618 = vmatpush1.msra.mxu0 0.0
  %1619 = vmatprep.subr.mxu0 0.0
  %1620 = vmatpush1.msra.mxu0 0.0
  %1621 = vmatprep.subr.mxu0 0.0
  %1622 = vmatpush1.msra.mxu0 0.0
  %1623 = vmatprep.subr.mxu0 0.0
  %1624 = vmatpush1.msra.mxu0 0.0
  %1625 = vmatprep.subr.mxu0 0.0
  %1626 = vmatpush1.msra.mxu0 0.0
  %1627 = vmatprep.subr.mxu0 0.0
  %1628 = vmatpush1.msra.mxu0 0.0
  %1629 = vmatprep.mubr.f32.mxu0 0.0
  %1630 = vmatmul.mubr.f32.gmra.mrb[0].mxu0 %v1560
  %v1631 = vpop.f32.mrb[0].mxu0
  %v1632 = vadd.f32 %v1557, %v1631
  %v1633 = vpop.f32.mrb[0].mxu0
  %1634 = vmatprep.mubr.f32.mxu0 0.0
  %1635 = vmatmul.mubr.f32.gmra.mrb[0].mxu0 %v1563
  %v1636 = vpop.f32.mrb[0].mxu0
  %v1637 = vadd.f32 %v1557, %v1636
  %v1638 = vpop.f32.mrb[0].mxu0
  %1639 = vdwg.mxu0
  %v1640 = vld [vmem:[%s19] sm:$0xff]
  %v1641 = vld [vmem:[%s19 + $0x8] sm:$0xff]
  %v1642 = vld [vmem:[%s19 + $0x10] sm:$0xff]
  %v1643 = vld [vmem:[%s19 + $0x18] sm:$0xff]
  %v1644 = vld [vmem:[%s20] sm:$0x1]
  %v1646 = vlaneseq
  %v1647 = vshrl.u32 %v1646, 7
  %v1648 = vsub.s32 0, %v1647
  %v1649 = vrot.slane %v1644, %v1648
  %v1652 = vsel %vm89, %v1632, 0
  %v1655 = vsel %vm89, %v1637, 0
  %1657 = vmatprep.subr.mxu0 0.0
  %1658 = vmatpush1.msra.mxu0 %v1640
  %1659 = vmatprep.subr.mxu0 0.0
  %1660 = vmatpush1.msra.mxu0 %v1641
  %1661 = vmatprep.subr.mxu0 0.0
  %1662 = vmatpush1.msra.mxu0 %v1642
  %1663 = vmatprep.subr.mxu0 0.0
  %1664 = vmatpush1.msra.mxu0 %v1643
  %1665 = vmatprep.subr.mxu0 0.0
  %1666 = vmatpush1.msra.mxu0 0.0
  %1667 = vmatprep.subr.mxu0 0.0
  %1668 = vmatpush1.msra.mxu0 0.0
  %1669 = vmatprep.subr.mxu0 0.0
  %1670 = vmatpush1.msra.mxu0 0.0
  %1671 = vmatprep.subr.mxu0 0.0
  %1672 = vmatpush1.msra.mxu0 0.0
  %1673 = vmatprep.subr.mxu0 0.0
  %1674 = vmatpush1.msra.mxu0 0.0
  %1675 = vmatprep.subr.mxu0 0.0
  %1676 = vmatpush1.msra.mxu0 0.0
  %1677 = vmatprep.subr.mxu0 0.0
  %1678 = vmatpush1.msra.mxu0 0.0
  %1679 = vmatprep.subr.mxu0 0.0
  %1680 = vmatpush1.msra.mxu0 0.0
  %1681 = vmatprep.subr.mxu0 0.0
  %1682 = vmatpush1.msra.mxu0 0.0
  %1683 = vmatprep.subr.mxu0 0.0
  %1684 = vmatpush1.msra.mxu0 0.0
  %1685 = vmatprep.subr.mxu0 0.0
  %1686 = vmatpush1.msra.mxu0 0.0
  %1687 = vmatprep.subr.mxu0 0.0
  %1688 = vmatpush1.msra.mxu0 0.0
  %1689 = vmatprep.subr.mxu0 0.0
  %1690 = vmatpush1.msra.mxu0 0.0
  %1691 = vmatprep.subr.mxu0 0.0
  %1692 = vmatpush1.msra.mxu0 0.0
  %1693 = vmatprep.subr.mxu0 0.0
  %1694 = vmatpush1.msra.mxu0 0.0
  %1695 = vmatprep.subr.mxu0 0.0
  %1696 = vmatpush1.msra.mxu0 0.0
  %1697 = vmatprep.subr.mxu0 0.0
  %1698 = vmatpush1.msra.mxu0 0.0
  %1699 = vmatprep.subr.mxu0 0.0
  %1700 = vmatpush1.msra.mxu0 0.0
  %1701 = vmatprep.subr.mxu0 0.0
  %1702 = vmatpush1.msra.mxu0 0.0
  %1703 = vmatprep.subr.mxu0 0.0
  %1704 = vmatpush1.msra.mxu0 0.0
  %1705 = vmatprep.subr.mxu0 0.0
  %1706 = vmatpush1.msra.mxu0 0.0
  %1707 = vmatprep.subr.mxu0 0.0
  %1708 = vmatpush1.msra.mxu0 0.0
  %1709 = vmatprep.subr.mxu0 0.0
  %1710 = vmatpush1.msra.mxu0 0.0
  %1711 = vmatprep.subr.mxu0 0.0
  %1712 = vmatpush1.msra.mxu0 0.0
  %1713 = vmatprep.subr.mxu0 0.0
  %1714 = vmatpush1.msra.mxu0 0.0
  %1715 = vmatprep.subr.mxu0 0.0
  %1716 = vmatpush1.msra.mxu0 0.0
  %1717 = vmatprep.subr.mxu0 0.0
  %1718 = vmatpush1.msra.mxu0 0.0
  %1719 = vmatprep.subr.mxu0 0.0
  %1720 = vmatpush1.msra.mxu0 0.0
  %1721 = vmatprep.mubr.f32.mxu0 0.0
  %1722 = vmatmul.mubr.f32.gmra.mrb[0].mxu0 %v1652
  %v1723 = vpop.f32.mrb[0].mxu0
  %v1724 = vadd.f32 %v1649, %v1723
  %v1725 = vpop.f32.mrb[0].mxu0
  %1726 = vmatprep.mubr.f32.mxu0 0.0
  %1727 = vmatmul.mubr.f32.gmra.mrb[0].mxu0 %v1655
  %v1728 = vpop.f32.mrb[0].mxu0
  %v1729 = vadd.f32 %v1649, %v1728
  %v1730 = vpop.f32.mrb[0].mxu0
  %1731 = vdwg.mxu0
  %1732 = vst [vmem:[%s21] sm:$0xff] %v1724
  %1733 = vst [vmem:[%s21 + $0x8] sm:$0xff] %v1729
  // Predicated region
  $region86: #{convs2s_forward.3} parent=0 // pred_check
    _
  $region87: #{convs2s_forward.3} parent=0 // pred_check_branch
    %1735 = sbr.rel (0) target = $region89
  $region88: #{convs2s_forward.3} parent=0 // pred_region
    _
  $region89: #{convs2s_forward.3} parent=0 // pred_fallthru
    _
  // Predicated region
  $region90: #{convs2s_forward.3} parent=0 // pred_check
    _
  $region91: #{convs2s_forward.3} parent=0 // pred_check_branch
    %1737 = sbr.rel (0) target = $region93
  $region92: #{convs2s_forward.3} parent=0 // pred_region
    _
  $region93: #{convs2s_forward.3} parent=0 // pred_fallthru
    _

</llo_original>
